<compile_context>
chip_gen: v7x
topology: tpu7x:2x2x1
jax: 0.10.0
libtpu: 0.0.40
codegen_flags: <defaults>
</compile_context>

<pallas_src>
from typing import NamedTuple

import jax
import jax.numpy as jnp
from jax import lax
from jax.experimental import pallas as pl
from jax.experimental.pallas import tpu as pltpu


def _round_up(n, m):
    return ((n + m - 1) // m) * m


def _pad2(a, rows, cols):
    return jnp.pad(a, ((0, rows - a.shape[0]), (0, cols - a.shape[1])))


def _vmem_capacity_bytes():
    """Per-core VMEM capacity (generation aware), conservative fallback."""
    try:
        info = pltpu.get_tpu_info()
        cap = getattr(info, "vmem_capacity_bytes", None)
        if cap:
            return int(cap)
    except Exception:
        pass
    return 64 * 1024 * 1024          # v7x-sized fallback (most conservative)


# ----------------------------- Pallas kernel ------------------------------ #
def mean_tucker_kernel(x_ref, r_ref, wt_ref, bn1_s_ref, bn1_b_ref,
                       e2p_ref, e2n_ref, out_ref, acc_ref):
    """Grid = (batch tiles [parallel], k tiles [arbitrary reduction]).

    x_ref   : (tb, d1p)            bf16  (bn0 affine already applied)
    r_ref   : (nch, tb, CH)        f32   (this k-tile's relation weights)
    wt_ref  : (nch, d1p, CH*d1p)   bf16  (W[k0+c*CH+t, i, j] at [c, i, t*d1p+j])
    bn1_*   : (1, d1p)             f32
    e2p/e2n : (tb, d1p)            bf16
    out_ref : (tb, 2)              f32   (col 0 = pred_p, col 1 = pred_n)
    acc_ref : (tb, d1p)            f32   scratch accumulator across k tiles
    """
    k = pl.program_id(1)
    nch, _, ch = r_ref.shape
    d1p = acc_ref.shape[1]

    @pl.when(k == 0)
    def _():
        acc_ref[...] = jnp.zeros_like(acc_ref)

    x = x_ref[...]                                       # (tb, d1p) bf16

    def chunk(c):
        # One lane-dense bf16 MXU matmul per chunk (f32 accumulate):
        #   zc[b, t*d1p + j] = sum_i x[b, i] * W[k0 + c*CH + t, i, j]
        zc = jnp.dot(x, wt_ref[c], preferred_element_type=jnp.float32)
        rc = r_ref[c]                                    # (tb, CH) f32
        # Weighted k-reduction on the VPU; init with the t=0 term.
        y = zc[:, 0:d1p] * rc[:, 0:1]
        for t in range(1, ch):                           # short static unroll
            y = y + zc[:, t * d1p:(t + 1) * d1p] * rc[:, t:t + 1]
        acc_ref[...] += y

    if nch <= 4:                                         # static chunk count
        for c in range(nch):
            chunk(c)
    else:
        def body(c, carry):
            chunk(c)
            return carry
        lax.fori_loop(0, nch, body, 0, unroll=min(nch, 8))

    # --- finalize on the last k tile: bn1 affine, scores, sigmoid ---
    @pl.when(k == pl.num_programs(1) - 1)
    def _():
        yv = acc_ref[...] * bn1_s_ref[...] + bn1_b_ref[...]
        sp = jnp.sum(yv * e2p_ref[...].astype(jnp.float32), axis=1, keepdims=True)
        sn = jnp.sum(yv * e2n_ref[...].astype(jnp.float32), axis=1, keepdims=True)
        out_ref[...] = jax.nn.sigmoid(jnp.concatenate([sp, sn], axis=1))


# --------------------------- one-time preparation -------------------------- #
class TuckerPlan(NamedTuple):
    d1: int
    d2: int
    d1p: int
    d2p: int
    k_tile: int
    ch: int
    nch: int
    nk: int
    batch_tile: int
    vmem_limit: int


def prepare_mean_tucker(params, *, k_chunk=8, batch_tile=256):
    """One-time preprocessing: pad + transpose + bf16-cast W, pad bn1, tiling.

    Hoisted out of the per-call path so every forward() reuses the persistent
    lane-dense Wt buffer instead of re-doing the full-W HBM transpose + cast.
    """
    W = params["W"]
    d2, d1, _ = W.shape
    d1p = _round_up(d1, 128)

    # Generation-aware VMEM budget (v5e/v6e: 128 MiB, v7x: 64 MiB per core).
    vmem_cap = _vmem_capacity_bytes()
    vmem_limit = min((vmem_cap * 3) // 4, 96 * 1024 * 1024)
    w_budget = vmem_limit // 4               # per (double-buffered) bf16 W tile

    # k tiling: pad d2 up to a multiple of the in-kernel chunk; prefer whole-W
    # VMEM residency (nk == 1) so W is fetched from HBM exactly once.
    ch = max(1, k_chunk)
    d2c = _round_up(d2, ch)
    bytes_per_k = d1p * d1p * 2              # one bf16 k-slab of Wt
    k_fit = max(ch, ((w_budget // bytes_per_k) // ch) * ch)
    k_tile = min(d2c, k_fit)
    nk = -(-d2c // k_tile)
    d2p = nk * k_tile
    nch = k_tile // ch

    # Lane-dense Wt, one contiguous slab per k grid step:
    #   Wt[k, c, i, t*d1p + j] = W[k*k_tile + c*ch + t, i, j]   (zero padded)
    Wp = jnp.pad(W, ((0, d2p - d2), (0, d1p - d1), (0, d1p - d1)))
    Wt = (Wp.reshape(nk, nch, ch, d1p, d1p)
            .transpose(0, 1, 3, 2, 4)
            .reshape(nk, nch, d1p, ch * d1p)
            .astype(jnp.bfloat16))

    buffers = dict(
        Eembed=params["Eembed"],
        Rembed=params["Rembed"],
        bn0_scale=params["bn0_scale"],
        bn0_bias=params["bn0_bias"],
        bn1_scale_p=_pad2(params["bn1_scale"], 1, d1p),
        bn1_bias_p=_pad2(params["bn1_bias"], 1, d1p),
        Wt=Wt,
    )
    plan = TuckerPlan(d1=d1, d2=d2, d1p=d1p, d2p=d2p, k_tile=k_tile, ch=ch,
                      nch=nch, nk=nk, batch_tile=batch_tile,
                      vmem_limit=vmem_limit)
    return buffers, plan


# ------------------------------- forward ----------------------------------- #
def mean_tucker_forward(buffers, e1_tok, r_tok, e2p_tok, e2n_tok, *, plan):
    Eemb, Remb = buffers["Eembed"], buffers["Rembed"]
    d1p, d2p = plan.d1p, plan.d2p
    nk, nch, ch = plan.nk, plan.nch, plan.ch
    B = e1_tok.shape[0]

    # Glue in plain JAX (fuses with the gathers): embedding lookup, sequence
    # mean, bn0 inference affine.  Kernel inputs are (B, d), not (B, L, d).
    e1 = Eemb[e1_tok].mean(axis=1)
    r = Remb[r_tok].mean(axis=1)
    e2p = Eemb[e2p_tok].mean(axis=1)
    e2n = Eemb[e2n_tok].mean(axis=1)
    x = e1 * buffers["bn0_scale"] + buffers["bn0_bias"]
    # TODO(synk): train-mode Dropout / batch-stat BatchNorm not implemented.

    # Batch tiling: bf16 rows want multiples of 16; keep >=2 batch tiles when
    # the batch allows it so both v7x TensorCores get work ("parallel" axis).
    Bp0 = _round_up(B, 16)
    tb = max(16, (min(plan.batch_tile, Bp0) // 16) * 16)
    if tb >= Bp0 and Bp0 >= 32:
        tb = max(16, ((Bp0 // 2) // 16) * 16)
    Bp = _round_up(Bp0, tb)
    nb = Bp // tb

    x_p = _pad2(x, Bp, d1p).astype(jnp.bfloat16)
    e2p_p = _pad2(e2p, Bp, d1p).astype(jnp.bfloat16)
    e2n_p = _pad2(e2n, Bp, d1p).astype(jnp.bfloat16)
    # r stays f32 (tiny); padded k columns are zero -> contribute nothing.
    r_t = (_pad2(r, Bp, d2p)
           .reshape(Bp, nk, nch, ch)
           .transpose(1, 2, 0, 3))                      # (nk, nch, Bp, ch)

    flops = 2 * Bp * d1p * d2p * d1p + 4 * Bp * d2p * d1p
    w_bytes = int(buffers["Wt"].size) * 2 * (nb if nk > 1 else 1)
    io_bytes = (x_p.size + e2p_p.size + e2n_p.size) * 2 + r_t.size * 4 + Bp * 8
    cost = pl.CostEstimate(flops=flops, transcendentals=2 * Bp,
                           bytes_accessed=w_bytes + io_bytes)

    out = pl.pallas_call(
        mean_tucker_kernel,
        out_shape=jax.ShapeDtypeStruct((Bp, 2), jnp.float32),
        grid_spec=pltpu.PrefetchScalarGridSpec(
            num_scalar_prefetch=0,
            grid=(nb, nk),
            in_specs=[
                pl.BlockSpec((tb, d1p), lambda b, k: (b, 0)),                  # x
                pl.BlockSpec((None, nch, tb, ch), lambda b, k: (k, 0, b, 0)),  # r
                pl.BlockSpec((None, nch, d1p, ch * d1p),
                             lambda b, k: (k, 0, 0, 0)),                       # Wt
                pl.BlockSpec((1, d1p), lambda b, k: (0, 0)),                   # bn1 scale
                pl.BlockSpec((1, d1p), lambda b, k: (0, 0)),                   # bn1 bias
                pl.BlockSpec((tb, d1p), lambda b, k: (b, 0)),                  # e2p
                pl.BlockSpec((tb, d1p), lambda b, k: (b, 0)),                  # e2n
            ],
            out_specs=pl.BlockSpec((tb, 2), lambda b, k: (b, 0)),
            scratch_shapes=[pltpu.VMEM((tb, d1p), jnp.float32)],
        ),
        compiler_params=pltpu.CompilerParams(
            dimension_semantics=("parallel", "arbitrary"),
            vmem_limit_bytes=plan.vmem_limit,
        ),
        cost_estimate=cost,
        # TODO(synk): with nk == 1, pipeline_mode=pl.Buffered(1) on Wt would
        #             drop the unused second W buffer (v7x VMEM headroom).
    )(x_p, r_t, buffers["Wt"], buffers["bn1_scale_p"], buffers["bn1_bias_p"],
      e2p_p, e2n_p)

    return out[:B, 0], out[:B, 1]           # match torch (B,) outputs


# ------------------------- plain-JAX reference ----------------------------- #
def mean_tucker_ref(params, e1_tok, r_tok, e2p_tok, e2n_tok):
    Eemb, Remb = params["Eembed"], params["Rembed"]
    e1 = Eemb[e1_tok].mean(axis=1)
    r = Remb[r_tok].mean(axis=1)
    e2p = Eemb[e2p_tok].mean(axis=1)
    e2n = Eemb[e2n_tok].mean(axis=1)

    x = e1 * params["bn0_scale"] + params["bn0_bias"]
    d2, d1, _ = params["W"].shape
    W_mat = (r @ params["W"].reshape(d2, d1 * d1)).reshape(-1, d1, d1)
    x = jnp.einsum("bi,bij->bj", x, W_mat)
    x = x * params["bn1_scale"] + params["bn1_bias"]
    return jax.nn.sigmoid((x * e2p).sum(1)), jax.nn.sigmoid((x * e2n).sum(1))


# ------------------------------ param init --------------------------------- #
def init_params(key, Evocab, Rvocab, d1, d2):
    k1, k2, k3 = jax.random.split(key, 3)
    Eembed = jax.random.normal(k1, (Evocab, d1), jnp.float32)
    Eembed = Eembed.at[0].set(0.0)                        # padding_idx=0
    Rembed = jax.random.normal(k2, (Rvocab, d2), jnp.float32)
    Rembed = Rembed.at[0].set(0.0)                        # padding_idx=0
    W = jax.random.uniform(k3, (d2, d1, d1), jnp.float32, minval=-1.0, maxval=1.0)

    # BatchNorm1d at init (eval mode): gamma=1, beta=0, mean=0, var=1, eps=1e-5
    eps = 1e-5
    gamma = jnp.ones((1, d1), jnp.float32)
    beta = jnp.zeros((1, d1), jnp.float32)
    rmean = jnp.zeros((1, d1), jnp.float32)
    rvar = jnp.ones((1, d1), jnp.float32)
    scale = gamma / jnp.sqrt(rvar + eps)
    bias = beta - rmean * scale

    return dict(Eembed=Eembed, Rembed=Rembed, W=W,
                bn0_scale=scale, bn0_bias=bias,
                bn1_scale=scale, bn1_bias=bias)


# --------------------------------- main ------------------------------------ #
if __name__ == "__main__":
    B, L, Lr = 4, 6, 3          # batch, entity seq len, relation seq len
    d1, d2 = 32, 16             # ent_vec_dim, rel_vec_dim
    Evocab, Rvocab = 100, 13

    key = jax.random.PRNGKey(0)
    kp, k1, k2, k3, k4 = jax.random.split(key, 5)
    params = init_params(kp, Evocab, Rvocab, d1, d2)

    e1_tok = jax.random.randint(k1, (B, L), 0, Evocab, dtype=jnp.int32)
    r_tok = jax.random.randint(k2, (B, Lr), 0, Rvocab, dtype=jnp.int32)
    e2p_tok = jax.random.randint(k3, (B, L), 0, Evocab, dtype=jnp.int32)
    e2n_tok = jax.random.randint(k4, (B, L), 0, Evocab, dtype=jnp.int32)

    # One-time prep: Wt pad/transpose/bf16 cast + tiling hoisted off the call path.
    buffers, plan = prepare_mean_tucker(params, k_chunk=8, batch_tile=256)

    fwd = jax.jit(mean_tucker_forward, static_argnames=("plan",))
    pred_p, pred_n = fwd(buffers, e1_tok, r_tok, e2p_tok, e2n_tok, plan=plan)
    jax.block_until_ready((pred_p, pred_n))

    ref_p, ref_n = mean_tucker_ref(params, e1_tok, r_tok, e2p_tok, e2n_tok)
    assert pred_p.shape == (B,) and pred_n.shape == (B,)
    # bf16 MXU operands (f32 accumulate) + bf16 e2 side inputs vs a full-f32
    # reference: sigmoid-level tolerance widened accordingly.
    assert jnp.allclose(pred_p, ref_p, atol=5e-2, rtol=2e-2)
    assert jnp.allclose(pred_n, ref_n, atol=5e-2, rtol=2e-2)

    print("KERNEL_OK")
</pallas_src>

<mosaic_0001>
module attributes {stable_mosaic.version = 11 : i64} {
  func.func @mean_tucker_kernel(%arg0: i32, %arg1: i32, %arg2: memref<16x128xbf16, #tpu.memory_space<vmem>>, %arg3: memref<1x2x16x8xf32, #tpu.memory_space<vmem>>, %arg4: memref<1x2x128x1024xbf16, #tpu.memory_space<vmem>>, %arg5: memref<1x128xf32, #tpu.memory_space<vmem>>, %arg6: memref<1x128xf32, #tpu.memory_space<vmem>>, %arg7: memref<16x128xbf16, #tpu.memory_space<vmem>>, %arg8: memref<16x128xbf16, #tpu.memory_space<vmem>>, %arg9: memref<16x2xf32, #tpu.memory_space<vmem>>, %arg10: memref<16x128xf32, #tpu.memory_space<vmem>>) attributes {dimension_semantics = [#tpu.dimension_semantics<parallel>, #tpu.dimension_semantics<arbitrary>], iteration_bounds = array<i64: 1, 1>, scalar_prefetch = 0 : i64, scratch_operands = 1 : i64, tpu.core_type = #tpu.core_type<tc>, window_params = [{transform_indices = @transform_0, window_bounds = array<i64: 16, 128>}, {transform_indices = @transform_1, window_bounds = array<i64: 1, 2, 16, 8>}, {transform_indices = @transform_2, window_bounds = array<i64: 1, 2, 128, 1024>}, {pipeline_mode = #tpu.pipeline_mode<synchronous>, transform_indices = @transform_3, window_bounds = array<i64: 1, 128>}, {pipeline_mode = #tpu.pipeline_mode<synchronous>, transform_indices = @transform_4, window_bounds = array<i64: 1, 128>}, {transform_indices = @transform_5, window_bounds = array<i64: 16, 128>}, {transform_indices = @transform_6, window_bounds = array<i64: 16, 128>}, {transform_indices = @transform_7, window_bounds = array<i64: 16, 2>}]} {
    %c0_i32 = arith.constant 0 : i32
    %0 = arith.cmpi eq, %arg1, %c0_i32 : i32
    %1 = arith.extui %0 : i1 to i32
    %c0_i32_0 = arith.constant 0 : i32
    %2 = arith.cmpi ne, %1, %c0_i32_0 : i32
    scf.if %2 {
      %cst_28 = arith.constant 0.000000e+00 : f32
      %101 = vector.broadcast %cst_28 : f32 to vector<16x128xf32>
      %c0_29 = arith.constant 0 : index
      %c0_30 = arith.constant 0 : index
      %102 = vector.load %arg10[%c0_29, %c0_30] : memref<16x128xf32, #tpu.memory_space<vmem>>, vector<16x128xf32>
      tpu.vector_store %arg10[%c0_29, %c0_30], %101 {strides = array<i32>} : memref<16x128xf32, #tpu.memory_space<vmem>>, vector<16x128xf32>,
    } else {
    }
    %c0 = arith.constant 0 : index
    %c0_1 = arith.constant 0 : index
    %3 = vector.load %arg2[%c0, %c0_1] : memref<16x128xbf16, #tpu.memory_space<vmem>>, vector<16x128xbf16>
    %c0_2 = arith.constant 0 : index
    %c0_3 = arith.constant 0 : index
    %c0_4 = arith.constant 0 : index
    %c0_5 = arith.constant 0 : index
    %4 = vector.load %arg4[%c0_2, %c0_3, %c0_4, %c0_5] : memref<1x2x128x1024xbf16, #tpu.memory_space<vmem>>, vector<1x1x128x1024xbf16>
    %5 = vector.shape_cast %4 : vector<1x1x128x1024xbf16> to vector<128x1024xbf16>
    %cst = arith.constant dense<0.000000e+00> : vector<16x1024xf32>
    %6 = tpu.matmul %3, %5, %cst {dimension_numbers = #tpu.dot_dimension_numbers<[1], [0], [0], [1], [0, 0, 1, 1], [], []>} : vector<16x128xbf16>, vector<128x1024xbf16>, vector<16x1024xf32> -> vector<16x1024xf32>
    %c0_6 = arith.constant 0 : index
    %c0_7 = arith.constant 0 : index
    %c0_8 = arith.constant 0 : index
    %c0_9 = arith.constant 0 : index
    %7 = vector.load %arg3[%c0_6, %c0_7, %c0_8, %c0_9] : memref<1x2x16x8xf32, #tpu.memory_space<vmem>>, vector<1x1x16x8xf32>
    %8 = vector.shape_cast %7 : vector<1x1x16x8xf32> to vector<16x8xf32>
    %9 = vector.extract_strided_slice %6 {offsets = [0, 0], sizes = [16, 128], strides = [1, 1]} : vector<16x1024xf32> to vector<16x128xf32>
    %10 = vector.extract_strided_slice %8 {offsets = [0, 0], sizes = [16, 1], strides = [1, 1]} : vector<16x8xf32> to vector<16x1xf32>
    %11 = vector.broadcast %10 : vector<16x1xf32> to vector<16x128xf32>
    %12 = arith.mulf %9, %11 : vector<16x128xf32>
    %13 = vector.extract_strided_slice %6 {offsets = [0, 128], sizes = [16, 128], strides = [1, 1]} : vector<16x1024xf32> to vector<16x128xf32>
    %14 = vector.extract_strided_slice %8 {offsets = [0, 1], sizes = [16, 1], strides = [1, 1]} : vector<16x8xf32> to vector<16x1xf32>
    %15 = vector.broadcast %14 : vector<16x1xf32> to vector<16x128xf32>
    %16 = arith.mulf %13, %15 : vector<16x128xf32>
    %17 = arith.addf %12, %16 : vector<16x128xf32>
    %18 = vector.extract_strided_slice %6 {offsets = [0, 256], sizes = [16, 128], strides = [1, 1]} : vector<16x1024xf32> to vector<16x128xf32>
    %19 = vector.extract_strided_slice %8 {offsets = [0, 2], sizes = [16, 1], strides = [1, 1]} : vector<16x8xf32> to vector<16x1xf32>
    %20 = vector.broadcast %19 : vector<16x1xf32> to vector<16x128xf32>
    %21 = arith.mulf %18, %20 : vector<16x128xf32>
    %22 = arith.addf %17, %21 : vector<16x128xf32>
    %23 = vector.extract_strided_slice %6 {offsets = [0, 384], sizes = [16, 128], strides = [1, 1]} : vector<16x1024xf32> to vector<16x128xf32>
    %24 = vector.extract_strided_slice %8 {offsets = [0, 3], sizes = [16, 1], strides = [1, 1]} : vector<16x8xf32> to vector<16x1xf32>
    %25 = vector.broadcast %24 : vector<16x1xf32> to vector<16x128xf32>
    %26 = arith.mulf %23, %25 : vector<16x128xf32>
    %27 = arith.addf %22, %26 : vector<16x128xf32>
    %28 = vector.extract_strided_slice %6 {offsets = [0, 512], sizes = [16, 128], strides = [1, 1]} : vector<16x1024xf32> to vector<16x128xf32>
    %29 = vector.extract_strided_slice %8 {offsets = [0, 4], sizes = [16, 1], strides = [1, 1]} : vector<16x8xf32> to vector<16x1xf32>
    %30 = vector.broadcast %29 : vector<16x1xf32> to vector<16x128xf32>
    %31 = arith.mulf %28, %30 : vector<16x128xf32>
    %32 = arith.addf %27, %31 : vector<16x128xf32>
    %33 = vector.extract_strided_slice %6 {offsets = [0, 640], sizes = [16, 128], strides = [1, 1]} : vector<16x1024xf32> to vector<16x128xf32>
    %34 = vector.extract_strided_slice %8 {offsets = [0, 5], sizes = [16, 1], strides = [1, 1]} : vector<16x8xf32> to vector<16x1xf32>
    %35 = vector.broadcast %34 : vector<16x1xf32> to vector<16x128xf32>
    %36 = arith.mulf %33, %35 : vector<16x128xf32>
    %37 = arith.addf %32, %36 : vector<16x128xf32>
    %38 = vector.extract_strided_slice %6 {offsets = [0, 768], sizes = [16, 128], strides = [1, 1]} : vector<16x1024xf32> to vector<16x128xf32>
    %39 = vector.extract_strided_slice %8 {offsets = [0, 6], sizes = [16, 1], strides = [1, 1]} : vector<16x8xf32> to vector<16x1xf32>
    %40 = vector.broadcast %39 : vector<16x1xf32> to vector<16x128xf32>
    %41 = arith.mulf %38, %40 : vector<16x128xf32>
    %42 = arith.addf %37, %41 : vector<16x128xf32>
    %43 = vector.extract_strided_slice %6 {offsets = [0, 896], sizes = [16, 128], strides = [1, 1]} : vector<16x1024xf32> to vector<16x128xf32>
    %44 = vector.extract_strided_slice %8 {offsets = [0, 7], sizes = [16, 1], strides = [1, 1]} : vector<16x8xf32> to vector<16x1xf32>
    %45 = vector.broadcast %44 : vector<16x1xf32> to vector<16x128xf32>
    %46 = arith.mulf %43, %45 : vector<16x128xf32>
    %47 = arith.addf %42, %46 : vector<16x128xf32>
    %c0_10 = arith.constant 0 : index
    %c0_11 = arith.constant 0 : index
    %48 = vector.load %arg10[%c0_10, %c0_11] : memref<16x128xf32, #tpu.memory_space<vmem>>, vector<16x128xf32>
    %49 = arith.addf %48, %47 : vector<16x128xf32>
    %c0_12 = arith.constant 0 : index
    %c0_13 = arith.constant 0 : index
    %50 = vector.load %arg10[%c0_12, %c0_13] : memref<16x128xf32, #tpu.memory_space<vmem>>, vector<16x128xf32>
    tpu.vector_store %arg10[%c0_12, %c0_13], %49 {strides = array<i32>} : memref<16x128xf32, #tpu.memory_space<vmem>>, vector<16x128xf32>,
    %c0_14 = arith.constant 0 : index
    %c1 = arith.constant 1 : index
    %c0_15 = arith.constant 0 : index
    %c0_16 = arith.constant 0 : index
    %51 = vector.load %arg4[%c0_14, %c1, %c0_15, %c0_16] : memref<1x2x128x1024xbf16, #tpu.memory_space<vmem>>, vector<1x1x128x1024xbf16>
    %52 = vector.shape_cast %51 : vector<1x1x128x1024xbf16> to vector<128x1024xbf16>
    %cst_17 = arith.constant dense<0.000000e+00> : vector<16x1024xf32>
    %53 = tpu.matmul %3, %52, %cst_17 {dimension_numbers = #tpu.dot_dimension_numbers<[1], [0], [0], [1], [0, 0, 1, 1], [], []>} : vector<16x128xbf16>, vector<128x1024xbf16>, vector<16x1024xf32> -> vector<16x1024xf32>
    %c0_18 = arith.constant 0 : index
    %c1_19 = arith.constant 1 : index
    %c0_20 = arith.constant 0 : index
    %c0_21 = arith.constant 0 : index
    %54 = vector.load %arg3[%c0_18, %c1_19, %c0_20, %c0_21] : memref<1x2x16x8xf32, #tpu.memory_space<vmem>>, vector<1x1x16x8xf32>
    %55 = vector.shape_cast %54 : vector<1x1x16x8xf32> to vector<16x8xf32>
    %56 = vector.extract_strided_slice %53 {offsets = [0, 0], sizes = [16, 128], strides = [1, 1]} : vector<16x1024xf32> to vector<16x128xf32>
    %57 = vector.extract_strided_slice %55 {offsets = [0, 0], sizes = [16, 1], strides = [1, 1]} : vector<16x8xf32> to vector<16x1xf32>
    %58 = vector.broadcast %57 : vector<16x1xf32> to vector<16x128xf32>
    %59 = arith.mulf %56, %58 : vector<16x128xf32>
    %60 = vector.extract_strided_slice %53 {offsets = [0, 128], sizes = [16, 128], strides = [1, 1]} : vector<16x1024xf32> to vector<16x128xf32>
    %61 = vector.extract_strided_slice %55 {offsets = [0, 1], sizes = [16, 1], strides = [1, 1]} : vector<16x8xf32> to vector<16x1xf32>
    %62 = vector.broadcast %61 : vector<16x1xf32> to vector<16x128xf32>
    %63 = arith.mulf %60, %62 : vector<16x128xf32>
    %64 = arith.addf %59, %63 : vector<16x128xf32>
    %65 = vector.extract_strided_slice %53 {offsets = [0, 256], sizes = [16, 128], strides = [1, 1]} : vector<16x1024xf32> to vector<16x128xf32>
    %66 = vector.extract_strided_slice %55 {offsets = [0, 2], sizes = [16, 1], strides = [1, 1]} : vector<16x8xf32> to vector<16x1xf32>
    %67 = vector.broadcast %66 : vector<16x1xf32> to vector<16x128xf32>
    %68 = arith.mulf %65, %67 : vector<16x128xf32>
    %69 = arith.addf %64, %68 : vector<16x128xf32>
    %70 = vector.extract_strided_slice %53 {offsets = [0, 384], sizes = [16, 128], strides = [1, 1]} : vector<16x1024xf32> to vector<16x128xf32>
    %71 = vector.extract_strided_slice %55 {offsets = [0, 3], sizes = [16, 1], strides = [1, 1]} : vector<16x8xf32> to vector<16x1xf32>
    %72 = vector.broadcast %71 : vector<16x1xf32> to vector<16x128xf32>
    %73 = arith.mulf %70, %72 : vector<16x128xf32>
    %74 = arith.addf %69, %73 : vector<16x128xf32>
    %75 = vector.extract_strided_slice %53 {offsets = [0, 512], sizes = [16, 128], strides = [1, 1]} : vector<16x1024xf32> to vector<16x128xf32>
    %76 = vector.extract_strided_slice %55 {offsets = [0, 4], sizes = [16, 1], strides = [1, 1]} : vector<16x8xf32> to vector<16x1xf32>
    %77 = vector.broadcast %76 : vector<16x1xf32> to vector<16x128xf32>
    %78 = arith.mulf %75, %77 : vector<16x128xf32>
    %79 = arith.addf %74, %78 : vector<16x128xf32>
    %80 = vector.extract_strided_slice %53 {offsets = [0, 640], sizes = [16, 128], strides = [1, 1]} : vector<16x1024xf32> to vector<16x128xf32>
    %81 = vector.extract_strided_slice %55 {offsets = [0, 5], sizes = [16, 1], strides = [1, 1]} : vector<16x8xf32> to vector<16x1xf32>
    %82 = vector.broadcast %81 : vector<16x1xf32> to vector<16x128xf32>
    %83 = arith.mulf %80, %82 : vector<16x128xf32>
    %84 = arith.addf %79, %83 : vector<16x128xf32>
    %85 = vector.extract_strided_slice %53 {offsets = [0, 768], sizes = [16, 128], strides = [1, 1]} : vector<16x1024xf32> to vector<16x128xf32>
    %86 = vector.extract_strided_slice %55 {offsets = [0, 6], sizes = [16, 1], strides = [1, 1]} : vector<16x8xf32> to vector<16x1xf32>
    %87 = vector.broadcast %86 : vector<16x1xf32> to vector<16x128xf32>
    %88 = arith.mulf %85, %87 : vector<16x128xf32>
    %89 = arith.addf %84, %88 : vector<16x128xf32>
    %90 = vector.extract_strided_slice %53 {offsets = [0, 896], sizes = [16, 128], strides = [1, 1]} : vector<16x1024xf32> to vector<16x128xf32>
    %91 = vector.extract_strided_slice %55 {offsets = [0, 7], sizes = [16, 1], strides = [1, 1]} : vector<16x8xf32> to vector<16x1xf32>
    %92 = vector.broadcast %91 : vector<16x1xf32> to vector<16x128xf32>
    %93 = arith.mulf %90, %92 : vector<16x128xf32>
    %94 = arith.addf %89, %93 : vector<16x128xf32>
    %c0_22 = arith.constant 0 : index
    %c0_23 = arith.constant 0 : index
    %95 = vector.load %arg10[%c0_22, %c0_23] : memref<16x128xf32, #tpu.memory_space<vmem>>, vector<16x128xf32>
    %96 = arith.addf %95, %94 : vector<16x128xf32>
    %c0_24 = arith.constant 0 : index
    %c0_25 = arith.constant 0 : index
    %97 = vector.load %arg10[%c0_24, %c0_25] : memref<16x128xf32, #tpu.memory_space<vmem>>, vector<16x128xf32>
    tpu.vector_store %arg10[%c0_24, %c0_25], %96 {strides = array<i32>} : memref<16x128xf32, #tpu.memory_space<vmem>>, vector<16x128xf32>,
    %c0_i32_26 = arith.constant 0 : i32
    %98 = arith.cmpi eq, %arg1, %c0_i32_26 : i32
    %99 = arith.extui %98 : i1 to i32
    %c0_i32_27 = arith.constant 0 : i32
    %100 = arith.cmpi ne, %99, %c0_i32_27 : i32
    scf.if %100 {
      %c0_28 = arith.constant 0 : index
      %c0_29 = arith.constant 0 : index
      %101 = vector.load %arg10[%c0_28, %c0_29] : memref<16x128xf32, #tpu.memory_space<vmem>>, vector<16x128xf32>
      %c0_30 = arith.constant 0 : index
      %c0_31 = arith.constant 0 : index
      %102 = vector.load %arg5[%c0_30, %c0_31] : memref<1x128xf32, #tpu.memory_space<vmem>>, vector<1x128xf32>
      %103 = vector.broadcast %102 : vector<1x128xf32> to vector<16x128xf32>
      %104 = arith.mulf %101, %103 : vector<16x128xf32>
      %c0_32 = arith.constant 0 : index
      %c0_33 = arith.constant 0 : index
      %105 = vector.load %arg6[%c0_32, %c0_33] : memref<1x128xf32, #tpu.memory_space<vmem>>, vector<1x128xf32>
      %106 = vector.broadcast %105 : vector<1x128xf32> to vector<16x128xf32>
      %107 = arith.addf %104, %106 : vector<16x128xf32>
      %c0_34 = arith.constant 0 : index
      %c0_35 = arith.constant 0 : index
      %108 = vector.load %arg7[%c0_34, %c0_35] : memref<16x128xbf16, #tpu.memory_space<vmem>>, vector<16x128xbf16>
      %109 = arith.extf %108 : vector<16x128xbf16> to vector<16x128xf32>
      %110 = arith.mulf %107, %109 : vector<16x128xf32>
      %cst_36 = arith.constant dense<0.000000e+00> : vector<16xf32>
      %111 = vector.multi_reduction <add>, %110, %cst_36 [1] : vector<16x128xf32> to vector<16xf32>
      %112 = vector.shape_cast %111 : vector<16xf32> to vector<16x1xf32>
      %c0_37 = arith.constant 0 : index
      %c0_38 = arith.constant 0 : index
      %113 = vector.load %arg8[%c0_37, %c0_38] : memref<16x128xbf16, #tpu.memory_space<vmem>>, vector<16x128xbf16>
      %114 = arith.extf %113 : vector<16x128xbf16> to vector<16x128xf32>
      %115 = arith.mulf %107, %114 : vector<16x128xf32>
      %cst_39 = arith.constant dense<0.000000e+00> : vector<16xf32>
      %116 = vector.multi_reduction <add>, %115, %cst_39 [1] : vector<16x128xf32> to vector<16xf32>
      %117 = vector.shape_cast %116 : vector<16xf32> to vector<16x1xf32>
      %118 = tpu.concatenate %112, %117 in 1 : vector<16x1xf32>, vector<16x1xf32> -> vector<16x2xf32>
      %119 = arith.negf %118 : vector<16x2xf32>
      %120 = math.exp %119 : vector<16x2xf32>
      %cst_40 = arith.constant 1.000000e+00 : f32
      %121 = vector.broadcast %cst_40 : f32 to vector<16x2xf32>
      %122 = arith.addf %121, %120 : vector<16x2xf32>
      %123 = arith.divf %121, %122 : vector<16x2xf32>
      %c0_41 = arith.constant 0 : index
      %c0_42 = arith.constant 0 : index
      %124 = vector.load %arg9[%c0_41, %c0_42] : memref<16x2xf32, #tpu.memory_space<vmem>>, vector<16x2xf32>
      tpu.vector_store %arg9[%c0_41, %c0_42], %123 {strides = array<i32>} : memref<16x2xf32, #tpu.memory_space<vmem>>, vector<16x2xf32>,
    } else {
    }
    return
  }
  func.func @transform_0(%arg0: i32, %arg1: i32) -> (i32, i32) {
    %c0_i32 = arith.constant 0 : i32
    %c0_i32_0 = arith.constant 0 : i32
    return %arg0, %c0_i32 : i32, i32
  }
  func.func @transform_1(%arg0: i32, %arg1: i32) -> (i32, i32, i32, i32) {
    %c0_i32 = arith.constant 0 : i32
    %c0_i32_0 = arith.constant 0 : i32
    %c0_i32_1 = arith.constant 0 : i32
    return %arg1, %c0_i32, %arg0, %c0_i32_0 : i32, i32, i32, i32
  }
  func.func @transform_2(%arg0: i32, %arg1: i32) -> (i32, i32, i32, i32) {
    %c0_i32 = arith.constant 0 : i32
    %c0_i32_0 = arith.constant 0 : i32
    %c0_i32_1 = arith.constant 0 : i32
    %c0_i32_2 = arith.constant 0 : i32
    return %arg1, %c0_i32, %c0_i32_0, %c0_i32_1 : i32, i32, i32, i32
  }
  func.func @transform_3(%arg0: i32, %arg1: i32) -> (i32, i32) {
    %c0_i32 = arith.constant 0 : i32
    %c0_i32_0 = arith.constant 0 : i32
    %c0_i32_1 = arith.constant 0 : i32
    return %c0_i32, %c0_i32_0 : i32, i32
  }
  func.func @transform_4(%arg0: i32, %arg1: i32) -> (i32, i32) {
    %c0_i32 = arith.constant 0 : i32
    %c0_i32_0 = arith.constant 0 : i32
    %c0_i32_1 = arith.constant 0 : i32
    return %c0_i32, %c0_i32_0 : i32, i32
  }
  func.func @transform_5(%arg0: i32, %arg1: i32) -> (i32, i32) {
    %c0_i32 = arith.constant 0 : i32
    %c0_i32_0 = arith.constant 0 : i32
    return %arg0, %c0_i32 : i32, i32
  }
  func.func @transform_6(%arg0: i32, %arg1: i32) -> (i32, i32) {
    %c0_i32 = arith.constant 0 : i32
    %c0_i32_0 = arith.constant 0 : i32
    return %arg0, %c0_i32 : i32, i32
  }
  func.func @transform_7(%arg0: i32, %arg1: i32) -> (i32, i32) {
    %c0_i32 = arith.constant 0 : i32
    %c0_i32_0 = arith.constant 0 : i32
    return %arg0, %c0_i32 : i32, i32
  }
}

</mosaic_0001>

<llo_original>
// kernel: mean_tucker_forward.1
$region0: #{mean_tucker_forward.1}
  #allocation0 [shape = 'u32[]', space=smem, size = 0x4, offset = 0x4, fixed_abs, tag = 'smem constant byte address 0x4 - core index']
  #allocation1 [shape = 'u32[144,128]{1,0:T(1,128)}', space=vmem, size = 0x12000, scoped, tag = 'internal scratch']
  #allocation2 [shape = 'f32[16,128]{1,0:T(8,128)}', space=vmem, size = 0x2000, scoped, tag = 'scratch operand']
  %s0 = inlined_call_operand.vmem [shape: bf16[16,128], index: 0, kind: input, shape index: {}]
  %s1 = inlined_call_operand.vmem [shape: f32[1,2,16,8], index: 1, kind: input, shape index: {}]
  %s2 = inlined_call_operand.vmem [shape: bf16[1,2,128,1024], index: 2, kind: input, shape index: {}]
  %s3 = inlined_call_operand.vmem [shape: f32[1,128], index: 3, kind: input, shape index: {}]
  %s4 = inlined_call_operand.vmem [shape: f32[1,128], index: 4, kind: input, shape index: {}]
  %s5 = inlined_call_operand.vmem [shape: bf16[16,128], index: 5, kind: input, shape index: {}]
  %s6 = inlined_call_operand.vmem [shape: bf16[16,128], index: 6, kind: input, shape index: {}]
  %s7 = inlined_call_operand.vmem [shape: f32[16,2], index: 7, kind: output, shape index: {}]
  %s8 = sld [smem:[#allocation0]]
  $region46: #{mean_tucker_forward.1} parent=0
    _
  %s10 = ssub.s32 1, %s8
  %s11 = scalar_select 0, %s10, %s8
  // Predicated region
  $region2: #{mean_tucker_forward.1} parent=0 // pred_check
    _
  $region3: #{mean_tucker_forward.1} parent=0 // pred_check_branch
    %13 = sbr.rel (0) target = $region5
  $region4: #{mean_tucker_forward.1} parent=0 // pred_region
    _
  $region5: #{mean_tucker_forward.1} parent=0 // pred_fallthru
    _
  // Predicated region
  $region6: #{mean_tucker_forward.1} parent=0 // pred_check
    _
  $region7: #{mean_tucker_forward.1} parent=0 // pred_check_branch
    %15 = sbr.rel (0) target = $region9
  $region8: #{mean_tucker_forward.1} parent=0 // pred_region
    _
  $region9: #{mean_tucker_forward.1} parent=0 // pred_fallthru
    _
  // Predicated region
  $region10: #{mean_tucker_forward.1} parent=0 // pred_check
    _
  $region11: #{mean_tucker_forward.1} parent=0 // pred_check_branch
    %17 = sbr.rel (0) target = $region13
  $region12: #{mean_tucker_forward.1} parent=0 // pred_region
    _
  $region13: #{mean_tucker_forward.1} parent=0 // pred_fallthru
    _
  // Predicated region
  $region14: #{mean_tucker_forward.1} parent=0 // pred_check
    _
  $region15: #{mean_tucker_forward.1} parent=0 // pred_check_branch
    %19 = sbr.rel (0) target = $region17
  $region16: #{mean_tucker_forward.1} parent=0 // pred_region
    _
  $region17: #{mean_tucker_forward.1} parent=0 // pred_fallthru
    _
  // Predicated region
  $region18: #{mean_tucker_forward.1} parent=0 // pred_check
    _
  $region19: #{mean_tucker_forward.1} parent=0 // pred_check_branch
    %21 = sbr.rel (0) target = $region21
  $region20: #{mean_tucker_forward.1} parent=0 // pred_region
    _
  $region21: #{mean_tucker_forward.1} parent=0 // pred_fallthru
    _
  // Predicated region
  $region22: #{mean_tucker_forward.1} parent=0 // pred_check
    _
  $region23: #{mean_tucker_forward.1} parent=0 // pred_check_branch
    %23 = sbr.rel (0) target = $region25
  $region24: #{mean_tucker_forward.1} parent=0 // pred_region
    _
  $region25: #{mean_tucker_forward.1} parent=0 // pred_fallthru
    _
  // Predicated region
  $region26: #{mean_tucker_forward.1} parent=0 // pred_check
    _
  $region27: #{mean_tucker_forward.1} parent=0 // pred_check_branch
    %25 = sbr.rel (0) target = $region29
  $region28: #{mean_tucker_forward.1} parent=0 // pred_region
    _
  $region29: #{mean_tucker_forward.1} parent=0 // pred_fallthru
    _
  %p27 = scmp.eq.s32.totalorder 0, 0
  // Predicated region
  $region30: #{mean_tucker_forward.1} parent=0 // pred_check
    %p28 = pneg %p27
  $region31: #{mean_tucker_forward.1} parent=0 // pred_check_branch
    %30 = sbr.rel (%p28) target = $region33
  $region32: #{mean_tucker_forward.1} parent=0 // pred_region
    %31 = vst [vmem:[#allocation2] sm:$0xff] 0.0
    %32 = vst [vmem:[#allocation2 + $0x8] sm:$0xff] 0.0
  $region33: #{mean_tucker_forward.1} parent=0 // pred_fallthru
    _
  %v33 = vld [vmem:[%s0] sm:$0xf]
  %v34 = vld [vmem:[%s0 + $0x4] sm:$0xf]
  %v35 = vld [vmem:[%s2] sm:$0xff]
  %v36 = vld [vmem:[%s2 + $0x8] sm:$0xff]
  %v37 = vld [vmem:[%s2 + $0x10] sm:$0xff]
  %v38 = vld [vmem:[%s2 + $0x18] sm:$0xff]
  %v39 = vld [vmem:[%s2 + $0x20] sm:$0xff]
  %v40 = vld [vmem:[%s2 + $0x28] sm:$0xff]
  %v41 = vld [vmem:[%s2 + $0x30] sm:$0xff]
  %v42 = vld [vmem:[%s2 + $0x38] sm:$0xff]
  %v43 = vld [vmem:[%s2 + $0x40] sm:$0xff]
  %v44 = vld [vmem:[%s2 + $0x48] sm:$0xff]
  %v45 = vld [vmem:[%s2 + $0x50] sm:$0xff]
  %v46 = vld [vmem:[%s2 + $0x58] sm:$0xff]
  %v47 = vld [vmem:[%s2 + $0x60] sm:$0xff]
  %v48 = vld [vmem:[%s2 + $0x68] sm:$0xff]
  %v49 = vld [vmem:[%s2 + $0x70] sm:$0xff]
  %v50 = vld [vmem:[%s2 + $0x78] sm:$0xff]
  %v51 = vld [vmem:[%s2 + $0x80] sm:$0xff]
  %v52 = vld [vmem:[%s2 + $0x88] sm:$0xff]
  %v53 = vld [vmem:[%s2 + $0x90] sm:$0xff]
  %v54 = vld [vmem:[%s2 + $0x98] sm:$0xff]
  %v55 = vld [vmem:[%s2 + $0xa0] sm:$0xff]
  %v56 = vld [vmem:[%s2 + $0xa8] sm:$0xff]
  %v57 = vld [vmem:[%s2 + $0xb0] sm:$0xff]
  %v58 = vld [vmem:[%s2 + $0xb8] sm:$0xff]
  %v59 = vld [vmem:[%s2 + $0xc0] sm:$0xff]
  %v60 = vld [vmem:[%s2 + $0xc8] sm:$0xff]
  %v61 = vld [vmem:[%s2 + $0xd0] sm:$0xff]
  %v62 = vld [vmem:[%s2 + $0xd8] sm:$0xff]
  %v63 = vld [vmem:[%s2 + $0xe0] sm:$0xff]
  %v64 = vld [vmem:[%s2 + $0xe8] sm:$0xff]
  %v65 = vld [vmem:[%s2 + $0xf0] sm:$0xff]
  %v66 = vld [vmem:[%s2 + $0xf8] sm:$0xff]
  %v67 = vld [vmem:[%s2 + $0x100] sm:$0xff]
  %v68 = vld [vmem:[%s2 + $0x108] sm:$0xff]
  %v69 = vld [vmem:[%s2 + $0x110] sm:$0xff]
  %v70 = vld [vmem:[%s2 + $0x118] sm:$0xff]
  %v71 = vld [vmem:[%s2 + $0x120] sm:$0xff]
  %v72 = vld [vmem:[%s2 + $0x128] sm:$0xff]
  %v73 = vld [vmem:[%s2 + $0x130] sm:$0xff]
  %v74 = vld [vmem:[%s2 + $0x138] sm:$0xff]
  %v75 = vld [vmem:[%s2 + $0x140] sm:$0xff]
  %v76 = vld [vmem:[%s2 + $0x148] sm:$0xff]
  %v77 = vld [vmem:[%s2 + $0x150] sm:$0xff]
  %v78 = vld [vmem:[%s2 + $0x158] sm:$0xff]
  %v79 = vld [vmem:[%s2 + $0x160] sm:$0xff]
  %v80 = vld [vmem:[%s2 + $0x168] sm:$0xff]
  %v81 = vld [vmem:[%s2 + $0x170] sm:$0xff]
  %v82 = vld [vmem:[%s2 + $0x178] sm:$0xff]
  %v83 = vld [vmem:[%s2 + $0x180] sm:$0xff]
  %v84 = vld [vmem:[%s2 + $0x188] sm:$0xff]
  %v85 = vld [vmem:[%s2 + $0x190] sm:$0xff]
  %v86 = vld [vmem:[%s2 + $0x198] sm:$0xff]
  %v87 = vld [vmem:[%s2 + $0x1a0] sm:$0xff]
  %v88 = vld [vmem:[%s2 + $0x1a8] sm:$0xff]
  %v89 = vld [vmem:[%s2 + $0x1b0] sm:$0xff]
  %v90 = vld [vmem:[%s2 + $0x1b8] sm:$0xff]
  %v91 = vld [vmem:[%s2 + $0x1c0] sm:$0xff]
  %v92 = vld [vmem:[%s2 + $0x1c8] sm:$0xff]
  %v93 = vld [vmem:[%s2 + $0x1d0] sm:$0xff]
  %v94 = vld [vmem:[%s2 + $0x1d8] sm:$0xff]
  %v95 = vld [vmem:[%s2 + $0x1e0] sm:$0xff]
  %v96 = vld [vmem:[%s2 + $0x1e8] sm:$0xff]
  %v97 = vld [vmem:[%s2 + $0x1f0] sm:$0xff]
  %v98 = vld [vmem:[%s2 + $0x1f8] sm:$0xff]
  %v101 = vunpack.c.l.b16 %v33
  %v102 = vunpack.c.l.b16 %v34
  %v103 = vpack.c.b16 %v102, %v101
  %v169 = vunpack.c.l.b16 %v35
  %v170 = vunpack.c.h.b16 %v35
  %v171 = vunpack.c.l.b16 %v36
  %v172 = vunpack.c.h.b16 %v36
  %v173 = vunpack.c.l.b16 %v37
  %v174 = vunpack.c.h.b16 %v37
  %v175 = vunpack.c.l.b16 %v38
  %v176 = vunpack.c.h.b16 %v38
  %v177 = vunpack.c.l.b16 %v39
  %v178 = vunpack.c.h.b16 %v39
  %v179 = vunpack.c.l.b16 %v40
  %v180 = vunpack.c.h.b16 %v40
  %v181 = vunpack.c.l.b16 %v41
  %v182 = vunpack.c.h.b16 %v41
  %v183 = vunpack.c.l.b16 %v42
  %v184 = vunpack.c.h.b16 %v42
  %v185 = vunpack.c.l.b16 %v43
  %v186 = vunpack.c.h.b16 %v43
  %v187 = vunpack.c.l.b16 %v44
  %v188 = vunpack.c.h.b16 %v44
  %v189 = vunpack.c.l.b16 %v45
  %v190 = vunpack.c.h.b16 %v45
  %v191 = vunpack.c.l.b16 %v46
  %v192 = vunpack.c.h.b16 %v46
  %v193 = vunpack.c.l.b16 %v47
  %v194 = vunpack.c.h.b16 %v47
  %v195 = vunpack.c.l.b16 %v48
  %v196 = vunpack.c.h.b16 %v48
  %v197 = vunpack.c.l.b16 %v49
  %v198 = vunpack.c.h.b16 %v49
  %v199 = vunpack.c.l.b16 %v50
  %v200 = vunpack.c.h.b16 %v50
  %v201 = vunpack.c.l.b16 %v51
  %v202 = vunpack.c.h.b16 %v51
  %v203 = vunpack.c.l.b16 %v52
  %v204 = vunpack.c.h.b16 %v52
  %v205 = vunpack.c.l.b16 %v53
  %v206 = vunpack.c.h.b16 %v53
  %v207 = vunpack.c.l.b16 %v54
  %v208 = vunpack.c.h.b16 %v54
  %v209 = vunpack.c.l.b16 %v55
  %v210 = vunpack.c.h.b16 %v55
  %v211 = vunpack.c.l.b16 %v56
  %v212 = vunpack.c.h.b16 %v56
  %v213 = vunpack.c.l.b16 %v57
  %v214 = vunpack.c.h.b16 %v57
  %v215 = vunpack.c.l.b16 %v58
  %v216 = vunpack.c.h.b16 %v58
  %v217 = vunpack.c.l.b16 %v59
  %v218 = vunpack.c.h.b16 %v59
  %v219 = vunpack.c.l.b16 %v60
  %v220 = vunpack.c.h.b16 %v60
  %v221 = vunpack.c.l.b16 %v61
  %v222 = vunpack.c.h.b16 %v61
  %v223 = vunpack.c.l.b16 %v62
  %v224 = vunpack.c.h.b16 %v62
  %v225 = vunpack.c.l.b16 %v63
  %v226 = vunpack.c.h.b16 %v63
  %v227 = vunpack.c.l.b16 %v64
  %v228 = vunpack.c.h.b16 %v64
  %v229 = vunpack.c.l.b16 %v65
  %v230 = vunpack.c.h.b16 %v65
  %v231 = vunpack.c.l.b16 %v66
  %v232 = vunpack.c.h.b16 %v66
  %v233 = vunpack.c.l.b16 %v67
  %v234 = vunpack.c.h.b16 %v67
  %v235 = vunpack.c.l.b16 %v68
  %v236 = vunpack.c.h.b16 %v68
  %v237 = vunpack.c.l.b16 %v69
  %v238 = vunpack.c.h.b16 %v69
  %v239 = vunpack.c.l.b16 %v70
  %v240 = vunpack.c.h.b16 %v70
  %v241 = vunpack.c.l.b16 %v71
  %v242 = vunpack.c.h.b16 %v71
  %v243 = vunpack.c.l.b16 %v72
  %v244 = vunpack.c.h.b16 %v72
  %v245 = vunpack.c.l.b16 %v73
  %v246 = vunpack.c.h.b16 %v73
  %v247 = vunpack.c.l.b16 %v74
  %v248 = vunpack.c.h.b16 %v74
  %v249 = vunpack.c.l.b16 %v75
  %v250 = vunpack.c.h.b16 %v75
  %v251 = vunpack.c.l.b16 %v76
  %v252 = vunpack.c.h.b16 %v76
  %v253 = vunpack.c.l.b16 %v77
  %v254 = vunpack.c.h.b16 %v77
  %v255 = vunpack.c.l.b16 %v78
  %v256 = vunpack.c.h.b16 %v78
  %v257 = vunpack.c.l.b16 %v79
  %v258 = vunpack.c.h.b16 %v79
  %v259 = vunpack.c.l.b16 %v80
  %v260 = vunpack.c.h.b16 %v80
  %v261 = vunpack.c.l.b16 %v81
  %v262 = vunpack.c.h.b16 %v81
  %v263 = vunpack.c.l.b16 %v82
  %v264 = vunpack.c.h.b16 %v82
  %v265 = vunpack.c.l.b16 %v83
  %v266 = vunpack.c.h.b16 %v83
  %v267 = vunpack.c.l.b16 %v84
  %v268 = vunpack.c.h.b16 %v84
  %v269 = vunpack.c.l.b16 %v85
  %v270 = vunpack.c.h.b16 %v85
  %v271 = vunpack.c.l.b16 %v86
  %v272 = vunpack.c.h.b16 %v86
  %v273 = vunpack.c.l.b16 %v87
  %v274 = vunpack.c.h.b16 %v87
  %v275 = vunpack.c.l.b16 %v88
  %v276 = vunpack.c.h.b16 %v88
  %v277 = vunpack.c.l.b16 %v89
  %v278 = vunpack.c.h.b16 %v89
  %v279 = vunpack.c.l.b16 %v90
  %v280 = vunpack.c.h.b16 %v90
  %v281 = vunpack.c.l.b16 %v91
  %v282 = vunpack.c.h.b16 %v91
  %v283 = vunpack.c.l.b16 %v92
  %v284 = vunpack.c.h.b16 %v92
  %v285 = vunpack.c.l.b16 %v93
  %v286 = vunpack.c.h.b16 %v93
  %v287 = vunpack.c.l.b16 %v94
  %v288 = vunpack.c.h.b16 %v94
  %v289 = vunpack.c.l.b16 %v95
  %v290 = vunpack.c.h.b16 %v95
  %v291 = vunpack.c.l.b16 %v96
  %v292 = vunpack.c.h.b16 %v96
  %v293 = vunpack.c.l.b16 %v97
  %v294 = vunpack.c.h.b16 %v97
  %v295 = vunpack.c.l.b16 %v98
  %v296 = vunpack.c.h.b16 %v98
  %v297 = vpack.c.b16 %v177, %v169
  %v298 = vpack.c.b16 %v178, %v170
  %v299 = vpack.c.b16 %v179, %v171
  %v300 = vpack.c.b16 %v180, %v172
  %v301 = vpack.c.b16 %v181, %v173
  %v302 = vpack.c.b16 %v182, %v174
  %v303 = vpack.c.b16 %v183, %v175
  %v304 = vpack.c.b16 %v184, %v176
  %v305 = vpack.c.b16 %v193, %v185
  %v306 = vpack.c.b16 %v194, %v186
  %v307 = vpack.c.b16 %v195, %v187
  %v308 = vpack.c.b16 %v196, %v188
  %v309 = vpack.c.b16 %v197, %v189
  %v310 = vpack.c.b16 %v198, %v190
  %v311 = vpack.c.b16 %v199, %v191
  %v312 = vpack.c.b16 %v200, %v192
  %v313 = vpack.c.b16 %v209, %v201
  %v314 = vpack.c.b16 %v210, %v202
  %v315 = vpack.c.b16 %v211, %v203
  %v316 = vpack.c.b16 %v212, %v204
  %v317 = vpack.c.b16 %v213, %v205
  %v318 = vpack.c.b16 %v214, %v206
  %v319 = vpack.c.b16 %v215, %v207
  %v320 = vpack.c.b16 %v216, %v208
  %v321 = vpack.c.b16 %v225, %v217
  %v322 = vpack.c.b16 %v226, %v218
  %v323 = vpack.c.b16 %v227, %v219
  %v324 = vpack.c.b16 %v228, %v220
  %v325 = vpack.c.b16 %v229, %v221
  %v326 = vpack.c.b16 %v230, %v222
  %v327 = vpack.c.b16 %v231, %v223
  %v328 = vpack.c.b16 %v232, %v224
  %v329 = vpack.c.b16 %v241, %v233
  %v330 = vpack.c.b16 %v242, %v234
  %v331 = vpack.c.b16 %v243, %v235
  %v332 = vpack.c.b16 %v244, %v236
  %v333 = vpack.c.b16 %v245, %v237
  %v334 = vpack.c.b16 %v246, %v238
  %v335 = vpack.c.b16 %v247, %v239
  %v336 = vpack.c.b16 %v248, %v240
  %v337 = vpack.c.b16 %v257, %v249
  %v338 = vpack.c.b16 %v258, %v250
  %v339 = vpack.c.b16 %v259, %v251
  %v340 = vpack.c.b16 %v260, %v252
  %v341 = vpack.c.b16 %v261, %v253
  %v342 = vpack.c.b16 %v262, %v254
  %v343 = vpack.c.b16 %v263, %v255
  %v344 = vpack.c.b16 %v264, %v256
  %v345 = vpack.c.b16 %v273, %v265
  %v346 = vpack.c.b16 %v274, %v266
  %v347 = vpack.c.b16 %v275, %v267
  %v348 = vpack.c.b16 %v276, %v268
  %v349 = vpack.c.b16 %v277, %v269
  %v350 = vpack.c.b16 %v278, %v270
  %v351 = vpack.c.b16 %v279, %v271
  %v352 = vpack.c.b16 %v280, %v272
  %v353 = vpack.c.b16 %v289, %v281
  %v354 = vpack.c.b16 %v290, %v282
  %v355 = vpack.c.b16 %v291, %v283
  %v356 = vpack.c.b16 %v292, %v284
  %v357 = vpack.c.b16 %v293, %v285
  %v358 = vpack.c.b16 %v294, %v286
  %v359 = vpack.c.b16 %v295, %v287
  %v360 = vpack.c.b16 %v296, %v288
  %425 = vmatprep.subr.bf16.mxu0 %v298
  %426 = vmatpush1.bf16.msra.mxu0 %v297
  %427 = vmatprep.subr.bf16.mxu0 %v306
  %428 = vmatpush1.bf16.msra.mxu0 %v305
  %429 = vmatprep.subr.bf16.mxu0 %v314
  %430 = vmatpush1.bf16.msra.mxu0 %v313
  %431 = vmatprep.subr.bf16.mxu0 %v322
  %432 = vmatpush1.bf16.msra.mxu0 %v321
  %433 = vmatprep.subr.bf16.mxu0 %v330
  %434 = vmatpush1.bf16.msra.mxu0 %v329
  %435 = vmatprep.subr.bf16.mxu0 %v338
  %436 = vmatpush1.bf16.msra.mxu0 %v337
  %437 = vmatprep.subr.bf16.mxu0 %v346
  %438 = vmatpush1.bf16.msra.mxu0 %v345
  %439 = vmatprep.subr.bf16.mxu0 %v354
  %440 = vmatpush1.bf16.msra.mxu0 %v353
  %441 = vmatprep.subr.bf16.mxu0 0
  %442 = vmatpush1.bf16.msra.mxu0 0
  %443 = vmatprep.subr.bf16.mxu0 0
  %444 = vmatpush1.bf16.msra.mxu0 0
  %445 = vmatprep.subr.bf16.mxu0 0
  %446 = vmatpush1.bf16.msra.mxu0 0
  %447 = vmatprep.subr.bf16.mxu0 0
  %448 = vmatpush1.bf16.msra.mxu0 0
  %449 = vmatprep.subr.bf16.mxu0 0
  %450 = vmatpush1.bf16.msra.mxu0 0
  %451 = vmatprep.subr.bf16.mxu0 0
  %452 = vmatpush1.bf16.msra.mxu0 0
  %453 = vmatprep.subr.bf16.mxu0 0
  %454 = vmatpush1.bf16.msra.mxu0 0
  %455 = vmatprep.subr.bf16.mxu0 0
  %456 = vmatpush1.bf16.msra.mxu0 0
  %457 = vmatprep.mubr.bf16.mxu0 0
  %458 = vmatmul.mubr.bf16.gmra.mrb[0].mxu0 %v103
  %v459 = vpop.f32.mrb[0].mxu0
  %v460 = vadd.f32 0.0, %v459
  %v461 = vpop.f32.mrb[0].mxu0
  %v462 = vadd.f32 0.0, %v461
  %v463 = vpop.f32.mrb[0].mxu0
  %v464 = vadd.f32 0.0, %v463
  %v465 = vpop.f32.mrb[0].mxu0
  %v466 = vadd.f32 0.0, %v465
  %467 = vdwg.mxu0
  %468 = vmatprep.subr.bf16.mxu0 %v300
  %469 = vmatpush1.bf16.msra.mxu0 %v299
  %470 = vmatprep.subr.bf16.mxu0 %v308
  %471 = vmatpush1.bf16.msra.mxu0 %v307
  %472 = vmatprep.subr.bf16.mxu0 %v316
  %473 = vmatpush1.bf16.msra.mxu0 %v315
  %474 = vmatprep.subr.bf16.mxu0 %v324
  %475 = vmatpush1.bf16.msra.mxu0 %v323
  %476 = vmatprep.subr.bf16.mxu0 %v332
  %477 = vmatpush1.bf16.msra.mxu0 %v331
  %478 = vmatprep.subr.bf16.mxu0 %v340
  %479 = vmatpush1.bf16.msra.mxu0 %v339
  %480 = vmatprep.subr.bf16.mxu0 %v348
  %481 = vmatpush1.bf16.msra.mxu0 %v347
  %482 = vmatprep.subr.bf16.mxu0 %v356
  %483 = vmatpush1.bf16.msra.mxu0 %v355
  %484 = vmatprep.subr.bf16.mxu0 0
  %485 = vmatpush1.bf16.msra.mxu0 0
  %486 = vmatprep.subr.bf16.mxu0 0
  %487 = vmatpush1.bf16.msra.mxu0 0
  %488 = vmatprep.subr.bf16.mxu0 0
  %489 = vmatpush1.bf16.msra.mxu0 0
  %490 = vmatprep.subr.bf16.mxu0 0
  %491 = vmatpush1.bf16.msra.mxu0 0
  %492 = vmatprep.subr.bf16.mxu0 0
  %493 = vmatpush1.bf16.msra.mxu0 0
  %494 = vmatprep.subr.bf16.mxu0 0
  %495 = vmatpush1.bf16.msra.mxu0 0
  %496 = vmatprep.subr.bf16.mxu0 0
  %497 = vmatpush1.bf16.msra.mxu0 0
  %498 = vmatprep.subr.bf16.mxu0 0
  %499 = vmatpush1.bf16.msra.mxu0 0
  %500 = vmatprep.mubr.bf16.mxu0 0
  %501 = vmatmul.mubr.bf16.gmra.mrb[0].mxu0 %v103
  %v502 = vpop.f32.mrb[0].mxu0
  %v503 = vadd.f32 0.0, %v502
  %v504 = vpop.f32.mrb[0].mxu0
  %v505 = vadd.f32 0.0, %v504
  %v506 = vpop.f32.mrb[0].mxu0
  %v507 = vadd.f32 0.0, %v506
  %v508 = vpop.f32.mrb[0].mxu0
  %v509 = vadd.f32 0.0, %v508
  %510 = vdwg.mxu0
  %511 = vmatprep.subr.bf16.mxu0 %v302
  %512 = vmatpush1.bf16.msra.mxu0 %v301
  %513 = vmatprep.subr.bf16.mxu0 %v310
  %514 = vmatpush1.bf16.msra.mxu0 %v309
  %515 = vmatprep.subr.bf16.mxu0 %v318
  %516 = vmatpush1.bf16.msra.mxu0 %v317
  %517 = vmatprep.subr.bf16.mxu0 %v326
  %518 = vmatpush1.bf16.msra.mxu0 %v325
  %519 = vmatprep.subr.bf16.mxu0 %v334
  %520 = vmatpush1.bf16.msra.mxu0 %v333
  %521 = vmatprep.subr.bf16.mxu0 %v342
  %522 = vmatpush1.bf16.msra.mxu0 %v341
  %523 = vmatprep.subr.bf16.mxu0 %v350
  %524 = vmatpush1.bf16.msra.mxu0 %v349
  %525 = vmatprep.subr.bf16.mxu0 %v358
  %526 = vmatpush1.bf16.msra.mxu0 %v357
  %527 = vmatprep.subr.bf16.mxu0 0
  %528 = vmatpush1.bf16.msra.mxu0 0
  %529 = vmatprep.subr.bf16.mxu0 0
  %530 = vmatpush1.bf16.msra.mxu0 0
  %531 = vmatprep.subr.bf16.mxu0 0
  %532 = vmatpush1.bf16.msra.mxu0 0
  %533 = vmatprep.subr.bf16.mxu0 0
  %534 = vmatpush1.bf16.msra.mxu0 0
  %535 = vmatprep.subr.bf16.mxu0 0
  %536 = vmatpush1.bf16.msra.mxu0 0
  %537 = vmatprep.subr.bf16.mxu0 0
  %538 = vmatpush1.bf16.msra.mxu0 0
  %539 = vmatprep.subr.bf16.mxu0 0
  %540 = vmatpush1.bf16.msra.mxu0 0
  %541 = vmatprep.subr.bf16.mxu0 0
  %542 = vmatpush1.bf16.msra.mxu0 0
  %543 = vmatprep.mubr.bf16.mxu0 0
  %544 = vmatmul.mubr.bf16.gmra.mrb[0].mxu0 %v103
  %v545 = vpop.f32.mrb[0].mxu0
  %v546 = vadd.f32 0.0, %v545
  %v547 = vpop.f32.mrb[0].mxu0
  %v548 = vadd.f32 0.0, %v547
  %v549 = vpop.f32.mrb[0].mxu0
  %v550 = vadd.f32 0.0, %v549
  %v551 = vpop.f32.mrb[0].mxu0
  %v552 = vadd.f32 0.0, %v551
  %553 = vdwg.mxu0
  %554 = vmatprep.subr.bf16.mxu0 %v304
  %555 = vmatpush1.bf16.msra.mxu0 %v303
  %556 = vmatprep.subr.bf16.mxu0 %v312
  %557 = vmatpush1.bf16.msra.mxu0 %v311
  %558 = vmatprep.subr.bf16.mxu0 %v320
  %559 = vmatpush1.bf16.msra.mxu0 %v319
  %560 = vmatprep.subr.bf16.mxu0 %v328
  %561 = vmatpush1.bf16.msra.mxu0 %v327
  %562 = vmatprep.subr.bf16.mxu0 %v336
  %563 = vmatpush1.bf16.msra.mxu0 %v335
  %564 = vmatprep.subr.bf16.mxu0 %v344
  %565 = vmatpush1.bf16.msra.mxu0 %v343
  %566 = vmatprep.subr.bf16.mxu0 %v352
  %567 = vmatpush1.bf16.msra.mxu0 %v351
  %568 = vmatprep.subr.bf16.mxu0 %v360
  %569 = vmatpush1.bf16.msra.mxu0 %v359
  %570 = vmatprep.subr.bf16.mxu0 0
  %571 = vmatpush1.bf16.msra.mxu0 0
  %572 = vmatprep.subr.bf16.mxu0 0
  %573 = vmatpush1.bf16.msra.mxu0 0
  %574 = vmatprep.subr.bf16.mxu0 0
  %575 = vmatpush1.bf16.msra.mxu0 0
  %576 = vmatprep.subr.bf16.mxu0 0
  %577 = vmatpush1.bf16.msra.mxu0 0
  %578 = vmatprep.subr.bf16.mxu0 0
  %579 = vmatpush1.bf16.msra.mxu0 0
  %580 = vmatprep.subr.bf16.mxu0 0
  %581 = vmatpush1.bf16.msra.mxu0 0
  %582 = vmatprep.subr.bf16.mxu0 0
  %583 = vmatpush1.bf16.msra.mxu0 0
  %584 = vmatprep.subr.bf16.mxu0 0
  %585 = vmatpush1.bf16.msra.mxu0 0
  %586 = vmatprep.mubr.bf16.mxu0 0
  %587 = vmatmul.mubr.bf16.gmra.mrb[0].mxu0 %v103
  %v588 = vpop.f32.mrb[0].mxu0
  %v589 = vadd.f32 0.0, %v588
  %v590 = vpop.f32.mrb[0].mxu0
  %v591 = vadd.f32 0.0, %v590
  %v592 = vpop.f32.mrb[0].mxu0
  %v593 = vadd.f32 0.0, %v592
  %v594 = vpop.f32.mrb[0].mxu0
  %v595 = vadd.f32 0.0, %v594
  %596 = vdwg.mxu0
  %v597 = vld [vmem:[%s1] sm:$0xff]
  %v598 = vld [vmem:[%s1 + $0x8] sm:$0xff]
  %600 = vset.pattern.permute.xlu0 0
  %601 = vperm.xlu0 %600, %v597
  %v602 = vpop.permute.xlu0 %601
  %605 = vset.pattern.permute.xlu0 0
  %606 = vperm.xlu0 %605, %v598
  %v607 = vpop.permute.xlu0 %606
  %v609 = vmul.f32 %v460, %v602
  %v610 = vmul.f32 %v464, %v607
  %611 = vset.pattern.permute.xlu0 1
  %612 = vperm.xlu0 %611, %v597
  %v613 = vpop.permute.xlu0 %612
  %615 = vset.pattern.permute.xlu0 1
  %616 = vperm.xlu0 %615, %v598
  %v617 = vpop.permute.xlu0 %616
  %v619 = vmul.f32 %v462, %v613
  %v620 = vmul.f32 %v466, %v617
  %v621 = vadd.f32 %v609, %v619
  %v622 = vadd.f32 %v610, %v620
  %623 = vset.pattern.permute.xlu0 2
  %624 = vperm.xlu0 %623, %v597
  %v625 = vpop.permute.xlu0 %624
  %627 = vset.pattern.permute.xlu0 2
  %628 = vperm.xlu0 %627, %v598
  %v629 = vpop.permute.xlu0 %628
  %v631 = vmul.f32 %v503, %v625
  %v632 = vmul.f32 %v507, %v629
  %v633 = vadd.f32 %v621, %v631
  %v634 = vadd.f32 %v622, %v632
  %635 = vset.pattern.permute.xlu0 3
  %636 = vperm.xlu0 %635, %v597
  %v637 = vpop.permute.xlu0 %636
  %639 = vset.pattern.permute.xlu0 3
  %640 = vperm.xlu0 %639, %v598
  %v641 = vpop.permute.xlu0 %640
  %v643 = vmul.f32 %v505, %v637
  %v644 = vmul.f32 %v509, %v641
  %v645 = vadd.f32 %v633, %v643
  %v646 = vadd.f32 %v634, %v644
  %647 = vset.pattern.permute.xlu0 4
  %648 = vperm.xlu0 %647, %v597
  %v649 = vpop.permute.xlu0 %648
  %651 = vset.pattern.permute.xlu0 4
  %652 = vperm.xlu0 %651, %v598
  %v653 = vpop.permute.xlu0 %652
  %v655 = vmul.f32 %v546, %v649
  %v656 = vmul.f32 %v550, %v653
  %v657 = vadd.f32 %v645, %v655
  %v658 = vadd.f32 %v646, %v656
  %659 = vset.pattern.permute.xlu0 5
  %660 = vperm.xlu0 %659, %v597
  %v661 = vpop.permute.xlu0 %660
  %663 = vset.pattern.permute.xlu0 5
  %664 = vperm.xlu0 %663, %v598
  %v665 = vpop.permute.xlu0 %664
  %v667 = vmul.f32 %v548, %v661
  %v668 = vmul.f32 %v552, %v665
  %v669 = vadd.f32 %v657, %v667
  %v670 = vadd.f32 %v658, %v668
  %671 = vset.pattern.permute.xlu0 6
  %672 = vperm.xlu0 %671, %v597
  %v673 = vpop.permute.xlu0 %672
  %675 = vset.pattern.permute.xlu0 6
  %676 = vperm.xlu0 %675, %v598
  %v677 = vpop.permute.xlu0 %676
  %v679 = vmul.f32 %v589, %v673
  %v680 = vmul.f32 %v593, %v677
  %v681 = vadd.f32 %v669, %v679
  %v682 = vadd.f32 %v670, %v680
  %683 = vset.pattern.permute.xlu0 7
  %684 = vperm.xlu0 %683, %v597
  %v685 = vpop.permute.xlu0 %684
  %687 = vset.pattern.permute.xlu0 7
  %688 = vperm.xlu0 %687, %v598
  %v689 = vpop.permute.xlu0 %688
  %v691 = vmul.f32 %v591, %v685
  %v692 = vmul.f32 %v595, %v689
  %v693 = vadd.f32 %v681, %v691
  %v694 = vadd.f32 %v682, %v692
  %v695 = vld [vmem:[#allocation2] sm:$0xff]
  %v696 = vld [vmem:[#allocation2 + $0x8] sm:$0xff]
  %v697 = vadd.f32 %v695, %v693
  %v698 = vadd.f32 %v696, %v694
  %699 = vst [vmem:[#allocation2] sm:$0xff] %v697
  %700 = vst [vmem:[#allocation2 + $0x8] sm:$0xff] %v698
  %s701 = scalar_lea.vmem %s2, 512
  %v702 = vld [vmem:[%s701] sm:$0xff]
  %v703 = vld [vmem:[%s701 + $0x8] sm:$0xff]
  %v704 = vld [vmem:[%s701 + $0x10] sm:$0xff]
  %v705 = vld [vmem:[%s701 + $0x18] sm:$0xff]
  %v706 = vld [vmem:[%s701 + $0x20] sm:$0xff]
  %v707 = vld [vmem:[%s701 + $0x28] sm:$0xff]
  %v708 = vld [vmem:[%s701 + $0x30] sm:$0xff]
  %v709 = vld [vmem:[%s701 + $0x38] sm:$0xff]
  %v710 = vld [vmem:[%s701 + $0x40] sm:$0xff]
  %v711 = vld [vmem:[%s701 + $0x48] sm:$0xff]
  %v712 = vld [vmem:[%s701 + $0x50] sm:$0xff]
  %v713 = vld [vmem:[%s701 + $0x58] sm:$0xff]
  %v714 = vld [vmem:[%s701 + $0x60] sm:$0xff]
  %v715 = vld [vmem:[%s701 + $0x68] sm:$0xff]
  %v716 = vld [vmem:[%s701 + $0x70] sm:$0xff]
  %v717 = vld [vmem:[%s701 + $0x78] sm:$0xff]
  %v718 = vld [vmem:[%s701 + $0x80] sm:$0xff]
  %v719 = vld [vmem:[%s701 + $0x88] sm:$0xff]
  %v720 = vld [vmem:[%s701 + $0x90] sm:$0xff]
  %v721 = vld [vmem:[%s701 + $0x98] sm:$0xff]
  %v722 = vld [vmem:[%s701 + $0xa0] sm:$0xff]
  %v723 = vld [vmem:[%s701 + $0xa8] sm:$0xff]
  %v724 = vld [vmem:[%s701 + $0xb0] sm:$0xff]
  %v725 = vld [vmem:[%s701 + $0xb8] sm:$0xff]
  %v726 = vld [vmem:[%s701 + $0xc0] sm:$0xff]
  %v727 = vld [vmem:[%s701 + $0xc8] sm:$0xff]
  %v728 = vld [vmem:[%s701 + $0xd0] sm:$0xff]
  %v729 = vld [vmem:[%s701 + $0xd8] sm:$0xff]
  %v730 = vld [vmem:[%s701 + $0xe0] sm:$0xff]
  %v731 = vld [vmem:[%s701 + $0xe8] sm:$0xff]
  %v732 = vld [vmem:[%s701 + $0xf0] sm:$0xff]
  %v733 = vld [vmem:[%s701 + $0xf8] sm:$0xff]
  %v734 = vld [vmem:[%s701 + $0x100] sm:$0xff]
  %v735 = vld [vmem:[%s701 + $0x108] sm:$0xff]
  %v736 = vld [vmem:[%s701 + $0x110] sm:$0xff]
  %v737 = vld [vmem:[%s701 + $0x118] sm:$0xff]
  %v738 = vld [vmem:[%s701 + $0x120] sm:$0xff]
  %v739 = vld [vmem:[%s701 + $0x128] sm:$0xff]
  %v740 = vld [vmem:[%s701 + $0x130] sm:$0xff]
  %v741 = vld [vmem:[%s701 + $0x138] sm:$0xff]
  %v742 = vld [vmem:[%s701 + $0x140] sm:$0xff]
  %v743 = vld [vmem:[%s701 + $0x148] sm:$0xff]
  %v744 = vld [vmem:[%s701 + $0x150] sm:$0xff]
  %v745 = vld [vmem:[%s701 + $0x158] sm:$0xff]
  %v746 = vld [vmem:[%s701 + $0x160] sm:$0xff]
  %v747 = vld [vmem:[%s701 + $0x168] sm:$0xff]
  %v748 = vld [vmem:[%s701 + $0x170] sm:$0xff]
  %v749 = vld [vmem:[%s701 + $0x178] sm:$0xff]
  %v750 = vld [vmem:[%s701 + $0x180] sm:$0xff]
  %v751 = vld [vmem:[%s701 + $0x188] sm:$0xff]
  %v752 = vld [vmem:[%s701 + $0x190] sm:$0xff]
  %v753 = vld [vmem:[%s701 + $0x198] sm:$0xff]
  %v754 = vld [vmem:[%s701 + $0x1a0] sm:$0xff]
  %v755 = vld [vmem:[%s701 + $0x1a8] sm:$0xff]
  %v756 = vld [vmem:[%s701 + $0x1b0] sm:$0xff]
  %v757 = vld [vmem:[%s701 + $0x1b8] sm:$0xff]
  %v758 = vld [vmem:[%s701 + $0x1c0] sm:$0xff]
  %v759 = vld [vmem:[%s701 + $0x1c8] sm:$0xff]
  %v760 = vld [vmem:[%s701 + $0x1d0] sm:$0xff]
  %v761 = vld [vmem:[%s701 + $0x1d8] sm:$0xff]
  %v762 = vld [vmem:[%s701 + $0x1e0] sm:$0xff]
  %v763 = vld [vmem:[%s701 + $0x1e8] sm:$0xff]
  %v764 = vld [vmem:[%s701 + $0x1f0] sm:$0xff]
  %v765 = vld [vmem:[%s701 + $0x1f8] sm:$0xff]
  %v830 = vunpack.c.l.b16 %v702
  %v831 = vunpack.c.h.b16 %v702
  %v832 = vunpack.c.l.b16 %v703
  %v833 = vunpack.c.h.b16 %v703
  %v834 = vunpack.c.l.b16 %v704
  %v835 = vunpack.c.h.b16 %v704
  %v836 = vunpack.c.l.b16 %v705
  %v837 = vunpack.c.h.b16 %v705
  %v838 = vunpack.c.l.b16 %v706
  %v839 = vunpack.c.h.b16 %v706
  %v840 = vunpack.c.l.b16 %v707
  %v841 = vunpack.c.h.b16 %v707
  %v842 = vunpack.c.l.b16 %v708
  %v843 = vunpack.c.h.b16 %v708
  %v844 = vunpack.c.l.b16 %v709
  %v845 = vunpack.c.h.b16 %v709
  %v846 = vunpack.c.l.b16 %v710
  %v847 = vunpack.c.h.b16 %v710
  %v848 = vunpack.c.l.b16 %v711
  %v849 = vunpack.c.h.b16 %v711
  %v850 = vunpack.c.l.b16 %v712
  %v851 = vunpack.c.h.b16 %v712
  %v852 = vunpack.c.l.b16 %v713
  %v853 = vunpack.c.h.b16 %v713
  %v854 = vunpack.c.l.b16 %v714
  %v855 = vunpack.c.h.b16 %v714
  %v856 = vunpack.c.l.b16 %v715
  %v857 = vunpack.c.h.b16 %v715
  %v858 = vunpack.c.l.b16 %v716
  %v859 = vunpack.c.h.b16 %v716
  %v860 = vunpack.c.l.b16 %v717
  %v861 = vunpack.c.h.b16 %v717
  %v862 = vunpack.c.l.b16 %v718
  %v863 = vunpack.c.h.b16 %v718
  %v864 = vunpack.c.l.b16 %v719
  %v865 = vunpack.c.h.b16 %v719
  %v866 = vunpack.c.l.b16 %v720
  %v867 = vunpack.c.h.b16 %v720
  %v868 = vunpack.c.l.b16 %v721
  %v869 = vunpack.c.h.b16 %v721
  %v870 = vunpack.c.l.b16 %v722
  %v871 = vunpack.c.h.b16 %v722
  %v872 = vunpack.c.l.b16 %v723
  %v873 = vunpack.c.h.b16 %v723
  %v874 = vunpack.c.l.b16 %v724
  %v875 = vunpack.c.h.b16 %v724
  %v876 = vunpack.c.l.b16 %v725
  %v877 = vunpack.c.h.b16 %v725
  %v878 = vunpack.c.l.b16 %v726
  %v879 = vunpack.c.h.b16 %v726
  %v880 = vunpack.c.l.b16 %v727
  %v881 = vunpack.c.h.b16 %v727
  %v882 = vunpack.c.l.b16 %v728
  %v883 = vunpack.c.h.b16 %v728
  %v884 = vunpack.c.l.b16 %v729
  %v885 = vunpack.c.h.b16 %v729
  %v886 = vunpack.c.l.b16 %v730
  %v887 = vunpack.c.h.b16 %v730
  %v888 = vunpack.c.l.b16 %v731
  %v889 = vunpack.c.h.b16 %v731
  %v890 = vunpack.c.l.b16 %v732
  %v891 = vunpack.c.h.b16 %v732
  %v892 = vunpack.c.l.b16 %v733
  %v893 = vunpack.c.h.b16 %v733
  %v894 = vunpack.c.l.b16 %v734
  %v895 = vunpack.c.h.b16 %v734
  %v896 = vunpack.c.l.b16 %v735
  %v897 = vunpack.c.h.b16 %v735
  %v898 = vunpack.c.l.b16 %v736
  %v899 = vunpack.c.h.b16 %v736
  %v900 = vunpack.c.l.b16 %v737
  %v901 = vunpack.c.h.b16 %v737
  %v902 = vunpack.c.l.b16 %v738
  %v903 = vunpack.c.h.b16 %v738
  %v904 = vunpack.c.l.b16 %v739
  %v905 = vunpack.c.h.b16 %v739
  %v906 = vunpack.c.l.b16 %v740
  %v907 = vunpack.c.h.b16 %v740
  %v908 = vunpack.c.l.b16 %v741
  %v909 = vunpack.c.h.b16 %v741
  %v910 = vunpack.c.l.b16 %v742
  %v911 = vunpack.c.h.b16 %v742
  %v912 = vunpack.c.l.b16 %v743
  %v913 = vunpack.c.h.b16 %v743
  %v914 = vunpack.c.l.b16 %v744
  %v915 = vunpack.c.h.b16 %v744
  %v916 = vunpack.c.l.b16 %v745
  %v917 = vunpack.c.h.b16 %v745
  %v918 = vunpack.c.l.b16 %v746
  %v919 = vunpack.c.h.b16 %v746
  %v920 = vunpack.c.l.b16 %v747
  %v921 = vunpack.c.h.b16 %v747
  %v922 = vunpack.c.l.b16 %v748
  %v923 = vunpack.c.h.b16 %v748
  %v924 = vunpack.c.l.b16 %v749
  %v925 = vunpack.c.h.b16 %v749
  %v926 = vunpack.c.l.b16 %v750
  %v927 = vunpack.c.h.b16 %v750
  %v928 = vunpack.c.l.b16 %v751
  %v929 = vunpack.c.h.b16 %v751
  %v930 = vunpack.c.l.b16 %v752
  %v931 = vunpack.c.h.b16 %v752
  %v932 = vunpack.c.l.b16 %v753
  %v933 = vunpack.c.h.b16 %v753
  %v934 = vunpack.c.l.b16 %v754
  %v935 = vunpack.c.h.b16 %v754
  %v936 = vunpack.c.l.b16 %v755
  %v937 = vunpack.c.h.b16 %v755
  %v938 = vunpack.c.l.b16 %v756
  %v939 = vunpack.c.h.b16 %v756
  %v940 = vunpack.c.l.b16 %v757
  %v941 = vunpack.c.h.b16 %v757
  %v942 = vunpack.c.l.b16 %v758
  %v943 = vunpack.c.h.b16 %v758
  %v944 = vunpack.c.l.b16 %v759
  %v945 = vunpack.c.h.b16 %v759
  %v946 = vunpack.c.l.b16 %v760
  %v947 = vunpack.c.h.b16 %v760
  %v948 = vunpack.c.l.b16 %v761
  %v949 = vunpack.c.h.b16 %v761
  %v950 = vunpack.c.l.b16 %v762
  %v951 = vunpack.c.h.b16 %v762
  %v952 = vunpack.c.l.b16 %v763
  %v953 = vunpack.c.h.b16 %v763
  %v954 = vunpack.c.l.b16 %v764
  %v955 = vunpack.c.h.b16 %v764
  %v956 = vunpack.c.l.b16 %v765
  %v957 = vunpack.c.h.b16 %v765
  %v958 = vpack.c.b16 %v838, %v830
  %v959 = vpack.c.b16 %v839, %v831
  %v960 = vpack.c.b16 %v840, %v832
  %v961 = vpack.c.b16 %v841, %v833
  %v962 = vpack.c.b16 %v842, %v834
  %v963 = vpack.c.b16 %v843, %v835
  %v964 = vpack.c.b16 %v844, %v836
  %v965 = vpack.c.b16 %v845, %v837
  %v966 = vpack.c.b16 %v854, %v846
  %v967 = vpack.c.b16 %v855, %v847
  %v968 = vpack.c.b16 %v856, %v848
  %v969 = vpack.c.b16 %v857, %v849
  %v970 = vpack.c.b16 %v858, %v850
  %v971 = vpack.c.b16 %v859, %v851
  %v972 = vpack.c.b16 %v860, %v852
  %v973 = vpack.c.b16 %v861, %v853
  %v974 = vpack.c.b16 %v870, %v862
  %v975 = vpack.c.b16 %v871, %v863
  %v976 = vpack.c.b16 %v872, %v864
  %v977 = vpack.c.b16 %v873, %v865
  %v978 = vpack.c.b16 %v874, %v866
  %v979 = vpack.c.b16 %v875, %v867
  %v980 = vpack.c.b16 %v876, %v868
  %v981 = vpack.c.b16 %v877, %v869
  %v982 = vpack.c.b16 %v886, %v878
  %v983 = vpack.c.b16 %v887, %v879
  %v984 = vpack.c.b16 %v888, %v880
  %v985 = vpack.c.b16 %v889, %v881
  %v986 = vpack.c.b16 %v890, %v882
  %v987 = vpack.c.b16 %v891, %v883
  %v988 = vpack.c.b16 %v892, %v884
  %v989 = vpack.c.b16 %v893, %v885
  %v990 = vpack.c.b16 %v902, %v894
  %v991 = vpack.c.b16 %v903, %v895
  %v992 = vpack.c.b16 %v904, %v896
  %v993 = vpack.c.b16 %v905, %v897
  %v994 = vpack.c.b16 %v906, %v898
  %v995 = vpack.c.b16 %v907, %v899
  %v996 = vpack.c.b16 %v908, %v900
  %v997 = vpack.c.b16 %v909, %v901
  %v998 = vpack.c.b16 %v918, %v910
  %v999 = vpack.c.b16 %v919, %v911
  %v1000 = vpack.c.b16 %v920, %v912
  %v1001 = vpack.c.b16 %v921, %v913
  %v1002 = vpack.c.b16 %v922, %v914
  %v1003 = vpack.c.b16 %v923, %v915
  %v1004 = vpack.c.b16 %v924, %v916
  %v1005 = vpack.c.b16 %v925, %v917
  %v1006 = vpack.c.b16 %v934, %v926
  %v1007 = vpack.c.b16 %v935, %v927
  %v1008 = vpack.c.b16 %v936, %v928
  %v1009 = vpack.c.b16 %v937, %v929
  %v1010 = vpack.c.b16 %v938, %v930
  %v1011 = vpack.c.b16 %v939, %v931
  %v1012 = vpack.c.b16 %v940, %v932
  %v1013 = vpack.c.b16 %v941, %v933
  %v1014 = vpack.c.b16 %v950, %v942
  %v1015 = vpack.c.b16 %v951, %v943
  %v1016 = vpack.c.b16 %v952, %v944
  %v1017 = vpack.c.b16 %v953, %v945
  %v1018 = vpack.c.b16 %v954, %v946
  %v1019 = vpack.c.b16 %v955, %v947
  %v1020 = vpack.c.b16 %v956, %v948
  %v1021 = vpack.c.b16 %v957, %v949
  %1086 = vmatprep.subr.bf16.mxu0 %v959
  %1087 = vmatpush1.bf16.msra.mxu0 %v958
  %1088 = vmatprep.subr.bf16.mxu0 %v967
  %1089 = vmatpush1.bf16.msra.mxu0 %v966
  %1090 = vmatprep.subr.bf16.mxu0 %v975
  %1091 = vmatpush1.bf16.msra.mxu0 %v974
  %1092 = vmatprep.subr.bf16.mxu0 %v983
  %1093 = vmatpush1.bf16.msra.mxu0 %v982
  %1094 = vmatprep.subr.bf16.mxu0 %v991
  %1095 = vmatpush1.bf16.msra.mxu0 %v990
  %1096 = vmatprep.subr.bf16.mxu0 %v999
  %1097 = vmatpush1.bf16.msra.mxu0 %v998
  %1098 = vmatprep.subr.bf16.mxu0 %v1007
  %1099 = vmatpush1.bf16.msra.mxu0 %v1006
  %1100 = vmatprep.subr.bf16.mxu0 %v1015
  %1101 = vmatpush1.bf16.msra.mxu0 %v1014
  %1102 = vmatprep.subr.bf16.mxu0 0
  %1103 = vmatpush1.bf16.msra.mxu0 0
  %1104 = vmatprep.subr.bf16.mxu0 0
  %1105 = vmatpush1.bf16.msra.mxu0 0
  %1106 = vmatprep.subr.bf16.mxu0 0
  %1107 = vmatpush1.bf16.msra.mxu0 0
  %1108 = vmatprep.subr.bf16.mxu0 0
  %1109 = vmatpush1.bf16.msra.mxu0 0
  %1110 = vmatprep.subr.bf16.mxu0 0
  %1111 = vmatpush1.bf16.msra.mxu0 0
  %1112 = vmatprep.subr.bf16.mxu0 0
  %1113 = vmatpush1.bf16.msra.mxu0 0
  %1114 = vmatprep.subr.bf16.mxu0 0
  %1115 = vmatpush1.bf16.msra.mxu0 0
  %1116 = vmatprep.subr.bf16.mxu0 0
  %1117 = vmatpush1.bf16.msra.mxu0 0
  %1118 = vmatprep.mubr.bf16.mxu0 0
  %1119 = vmatmul.mubr.bf16.gmra.mrb[0].mxu0 %v103
  %v1120 = vpop.f32.mrb[0].mxu0
  %v1121 = vadd.f32 0.0, %v1120
  %v1122 = vpop.f32.mrb[0].mxu0
  %v1123 = vadd.f32 0.0, %v1122
  %v1124 = vpop.f32.mrb[0].mxu0
  %v1125 = vadd.f32 0.0, %v1124
  %v1126 = vpop.f32.mrb[0].mxu0
  %v1127 = vadd.f32 0.0, %v1126
  %1128 = vdwg.mxu0
  %1129 = vmatprep.subr.bf16.mxu0 %v961
  %1130 = vmatpush1.bf16.msra.mxu0 %v960
  %1131 = vmatprep.subr.bf16.mxu0 %v969
  %1132 = vmatpush1.bf16.msra.mxu0 %v968
  %1133 = vmatprep.subr.bf16.mxu0 %v977
  %1134 = vmatpush1.bf16.msra.mxu0 %v976
  %1135 = vmatprep.subr.bf16.mxu0 %v985
  %1136 = vmatpush1.bf16.msra.mxu0 %v984
  %1137 = vmatprep.subr.bf16.mxu0 %v993
  %1138 = vmatpush1.bf16.msra.mxu0 %v992
  %1139 = vmatprep.subr.bf16.mxu0 %v1001
  %1140 = vmatpush1.bf16.msra.mxu0 %v1000
  %1141 = vmatprep.subr.bf16.mxu0 %v1009
  %1142 = vmatpush1.bf16.msra.mxu0 %v1008
  %1143 = vmatprep.subr.bf16.mxu0 %v1017
  %1144 = vmatpush1.bf16.msra.mxu0 %v1016
  %1145 = vmatprep.subr.bf16.mxu0 0
  %1146 = vmatpush1.bf16.msra.mxu0 0
  %1147 = vmatprep.subr.bf16.mxu0 0
  %1148 = vmatpush1.bf16.msra.mxu0 0
  %1149 = vmatprep.subr.bf16.mxu0 0
  %1150 = vmatpush1.bf16.msra.mxu0 0
  %1151 = vmatprep.subr.bf16.mxu0 0
  %1152 = vmatpush1.bf16.msra.mxu0 0
  %1153 = vmatprep.subr.bf16.mxu0 0
  %1154 = vmatpush1.bf16.msra.mxu0 0
  %1155 = vmatprep.subr.bf16.mxu0 0
  %1156 = vmatpush1.bf16.msra.mxu0 0
  %1157 = vmatprep.subr.bf16.mxu0 0
  %1158 = vmatpush1.bf16.msra.mxu0 0
  %1159 = vmatprep.subr.bf16.mxu0 0
  %1160 = vmatpush1.bf16.msra.mxu0 0
  %1161 = vmatprep.mubr.bf16.mxu0 0
  %1162 = vmatmul.mubr.bf16.gmra.mrb[0].mxu0 %v103
  %v1163 = vpop.f32.mrb[0].mxu0
  %v1164 = vadd.f32 0.0, %v1163
  %v1165 = vpop.f32.mrb[0].mxu0
  %v1166 = vadd.f32 0.0, %v1165
  %v1167 = vpop.f32.mrb[0].mxu0
  %v1168 = vadd.f32 0.0, %v1167
  %v1169 = vpop.f32.mrb[0].mxu0
  %v1170 = vadd.f32 0.0, %v1169
  %1171 = vdwg.mxu0
  %1172 = vmatprep.subr.bf16.mxu0 %v963
  %1173 = vmatpush1.bf16.msra.mxu0 %v962
  %1174 = vmatprep.subr.bf16.mxu0 %v971
  %1175 = vmatpush1.bf16.msra.mxu0 %v970
  %1176 = vmatprep.subr.bf16.mxu0 %v979
  %1177 = vmatpush1.bf16.msra.mxu0 %v978
  %1178 = vmatprep.subr.bf16.mxu0 %v987
  %1179 = vmatpush1.bf16.msra.mxu0 %v986
  %1180 = vmatprep.subr.bf16.mxu0 %v995
  %1181 = vmatpush1.bf16.msra.mxu0 %v994
  %1182 = vmatprep.subr.bf16.mxu0 %v1003
  %1183 = vmatpush1.bf16.msra.mxu0 %v1002
  %1184 = vmatprep.subr.bf16.mxu0 %v1011
  %1185 = vmatpush1.bf16.msra.mxu0 %v1010
  %1186 = vmatprep.subr.bf16.mxu0 %v1019
  %1187 = vmatpush1.bf16.msra.mxu0 %v1018
  %1188 = vmatprep.subr.bf16.mxu0 0
  %1189 = vmatpush1.bf16.msra.mxu0 0
  %1190 = vmatprep.subr.bf16.mxu0 0
  %1191 = vmatpush1.bf16.msra.mxu0 0
  %1192 = vmatprep.subr.bf16.mxu0 0
  %1193 = vmatpush1.bf16.msra.mxu0 0
  %1194 = vmatprep.subr.bf16.mxu0 0
  %1195 = vmatpush1.bf16.msra.mxu0 0
  %1196 = vmatprep.subr.bf16.mxu0 0
  %1197 = vmatpush1.bf16.msra.mxu0 0
  %1198 = vmatprep.subr.bf16.mxu0 0
  %1199 = vmatpush1.bf16.msra.mxu0 0
  %1200 = vmatprep.subr.bf16.mxu0 0
  %1201 = vmatpush1.bf16.msra.mxu0 0
  %1202 = vmatprep.subr.bf16.mxu0 0
  %1203 = vmatpush1.bf16.msra.mxu0 0
  %1204 = vmatprep.mubr.bf16.mxu0 0
  %1205 = vmatmul.mubr.bf16.gmra.mrb[0].mxu0 %v103
  %v1206 = vpop.f32.mrb[0].mxu0
  %v1207 = vadd.f32 0.0, %v1206
  %v1208 = vpop.f32.mrb[0].mxu0
  %v1209 = vadd.f32 0.0, %v1208
  %v1210 = vpop.f32.mrb[0].mxu0
  %v1211 = vadd.f32 0.0, %v1210
  %v1212 = vpop.f32.mrb[0].mxu0
  %v1213 = vadd.f32 0.0, %v1212
  %1214 = vdwg.mxu0
  %1215 = vmatprep.subr.bf16.mxu0 %v965
  %1216 = vmatpush1.bf16.msra.mxu0 %v964
  %1217 = vmatprep.subr.bf16.mxu0 %v973
  %1218 = vmatpush1.bf16.msra.mxu0 %v972
  %1219 = vmatprep.subr.bf16.mxu0 %v981
  %1220 = vmatpush1.bf16.msra.mxu0 %v980
  %1221 = vmatprep.subr.bf16.mxu0 %v989
  %1222 = vmatpush1.bf16.msra.mxu0 %v988
  %1223 = vmatprep.subr.bf16.mxu0 %v997
  %1224 = vmatpush1.bf16.msra.mxu0 %v996
  %1225 = vmatprep.subr.bf16.mxu0 %v1005
  %1226 = vmatpush1.bf16.msra.mxu0 %v1004
  %1227 = vmatprep.subr.bf16.mxu0 %v1013
  %1228 = vmatpush1.bf16.msra.mxu0 %v1012
  %1229 = vmatprep.subr.bf16.mxu0 %v1021
  %1230 = vmatpush1.bf16.msra.mxu0 %v1020
  %1231 = vmatprep.subr.bf16.mxu0 0
  %1232 = vmatpush1.bf16.msra.mxu0 0
  %1233 = vmatprep.subr.bf16.mxu0 0
  %1234 = vmatpush1.bf16.msra.mxu0 0
  %1235 = vmatprep.subr.bf16.mxu0 0
  %1236 = vmatpush1.bf16.msra.mxu0 0
  %1237 = vmatprep.subr.bf16.mxu0 0
  %1238 = vmatpush1.bf16.msra.mxu0 0
  %1239 = vmatprep.subr.bf16.mxu0 0
  %1240 = vmatpush1.bf16.msra.mxu0 0
  %1241 = vmatprep.subr.bf16.mxu0 0
  %1242 = vmatpush1.bf16.msra.mxu0 0
  %1243 = vmatprep.subr.bf16.mxu0 0
  %1244 = vmatpush1.bf16.msra.mxu0 0
  %1245 = vmatprep.subr.bf16.mxu0 0
  %1246 = vmatpush1.bf16.msra.mxu0 0
  %1247 = vmatprep.mubr.bf16.mxu0 0
  %1248 = vmatmul.mubr.bf16.gmra.mrb[0].mxu0 %v103
  %v1249 = vpop.f32.mrb[0].mxu0
  %v1250 = vadd.f32 0.0, %v1249
  %v1251 = vpop.f32.mrb[0].mxu0
  %v1252 = vadd.f32 0.0, %v1251
  %v1253 = vpop.f32.mrb[0].mxu0
  %v1254 = vadd.f32 0.0, %v1253
  %v1255 = vpop.f32.mrb[0].mxu0
  %v1256 = vadd.f32 0.0, %v1255
  %1257 = vdwg.mxu0
  %s1258 = scalar_lea.vmem %s1, 16
  %v1259 = vld [vmem:[%s1258] sm:$0xff]
  %v1260 = vld [vmem:[%s1258 + $0x8] sm:$0xff]
  %1262 = vset.pattern.permute.xlu0 0
  %1263 = vperm.xlu0 %1262, %v1259
  %v1264 = vpop.permute.xlu0 %1263
  %1267 = vset.pattern.permute.xlu0 0
  %1268 = vperm.xlu0 %1267, %v1260
  %v1269 = vpop.permute.xlu0 %1268
  %v1271 = vmul.f32 %v1121, %v1264
  %v1272 = vmul.f32 %v1125, %v1269
  %1273 = vset.pattern.permute.xlu0 1
  %1274 = vperm.xlu0 %1273, %v1259
  %v1275 = vpop.permute.xlu0 %1274
  %1277 = vset.pattern.permute.xlu0 1
  %1278 = vperm.xlu0 %1277, %v1260
  %v1279 = vpop.permute.xlu0 %1278
  %v1281 = vmul.f32 %v1123, %v1275
  %v1282 = vmul.f32 %v1127, %v1279
  %v1283 = vadd.f32 %v1271, %v1281
  %v1284 = vadd.f32 %v1272, %v1282
  %1285 = vset.pattern.permute.xlu0 2
  %1286 = vperm.xlu0 %1285, %v1259
  %v1287 = vpop.permute.xlu0 %1286
  %1289 = vset.pattern.permute.xlu0 2
  %1290 = vperm.xlu0 %1289, %v1260
  %v1291 = vpop.permute.xlu0 %1290
  %v1293 = vmul.f32 %v1164, %v1287
  %v1294 = vmul.f32 %v1168, %v1291
  %v1295 = vadd.f32 %v1283, %v1293
  %v1296 = vadd.f32 %v1284, %v1294
  %1297 = vset.pattern.permute.xlu0 3
  %1298 = vperm.xlu0 %1297, %v1259
  %v1299 = vpop.permute.xlu0 %1298
  %1301 = vset.pattern.permute.xlu0 3
  %1302 = vperm.xlu0 %1301, %v1260
  %v1303 = vpop.permute.xlu0 %1302
  %v1305 = vmul.f32 %v1166, %v1299
  %v1306 = vmul.f32 %v1170, %v1303
  %v1307 = vadd.f32 %v1295, %v1305
  %v1308 = vadd.f32 %v1296, %v1306
  %1309 = vset.pattern.permute.xlu0 4
  %1310 = vperm.xlu0 %1309, %v1259
  %v1311 = vpop.permute.xlu0 %1310
  %1313 = vset.pattern.permute.xlu0 4
  %1314 = vperm.xlu0 %1313, %v1260
  %v1315 = vpop.permute.xlu0 %1314
  %v1317 = vmul.f32 %v1207, %v1311
  %v1318 = vmul.f32 %v1211, %v1315
  %v1319 = vadd.f32 %v1307, %v1317
  %v1320 = vadd.f32 %v1308, %v1318
  %1321 = vset.pattern.permute.xlu0 5
  %1322 = vperm.xlu0 %1321, %v1259
  %v1323 = vpop.permute.xlu0 %1322
  %1325 = vset.pattern.permute.xlu0 5
  %1326 = vperm.xlu0 %1325, %v1260
  %v1327 = vpop.permute.xlu0 %1326
  %v1329 = vmul.f32 %v1209, %v1323
  %v1330 = vmul.f32 %v1213, %v1327
  %v1331 = vadd.f32 %v1319, %v1329
  %v1332 = vadd.f32 %v1320, %v1330
  %1333 = vset.pattern.permute.xlu0 6
  %1334 = vperm.xlu0 %1333, %v1259
  %v1335 = vpop.permute.xlu0 %1334
  %1337 = vset.pattern.permute.xlu0 6
  %1338 = vperm.xlu0 %1337, %v1260
  %v1339 = vpop.permute.xlu0 %1338
  %v1341 = vmul.f32 %v1250, %v1335
  %v1342 = vmul.f32 %v1254, %v1339
  %v1343 = vadd.f32 %v1331, %v1341
  %v1344 = vadd.f32 %v1332, %v1342
  %1345 = vset.pattern.permute.xlu0 7
  %1346 = vperm.xlu0 %1345, %v1259
  %v1347 = vpop.permute.xlu0 %1346
  %1349 = vset.pattern.permute.xlu0 7
  %1350 = vperm.xlu0 %1349, %v1260
  %v1351 = vpop.permute.xlu0 %1350
  %v1353 = vmul.f32 %v1252, %v1347
  %v1354 = vmul.f32 %v1256, %v1351
  %v1355 = vadd.f32 %v1343, %v1353
  %v1356 = vadd.f32 %v1344, %v1354
  %v1357 = vld [vmem:[#allocation2] sm:$0xff]
  %v1358 = vld [vmem:[#allocation2 + $0x8] sm:$0xff]
  %v1359 = vadd.f32 %v1357, %v1355
  %v1360 = vadd.f32 %v1358, %v1356
  %1361 = vst [vmem:[#allocation2] sm:$0xff] %v1359
  %1362 = vst [vmem:[#allocation2 + $0x8] sm:$0xff] %v1360
  // Predicated region
  $region34: #{mean_tucker_forward.1} parent=0 // pred_check
    %p1363 = pneg %p27
  $region35: #{mean_tucker_forward.1} parent=0 // pred_check_branch
    %1365 = sbr.rel (%p1363) target = $region37
  $region36: #{mean_tucker_forward.1} parent=0 // pred_region
    %v1366 = vld [vmem:[#allocation2] sm:$0xff]
    %v1367 = vld [vmem:[#allocation2 + $0x8] sm:$0xff]
    %v1368 = vld [vmem:[%s3] sm:$0x1]
    %v1370 = vlaneseq
    %v1371 = vshrl.u32 %v1370, 7
    %v1372 = vsub.s32 0, %v1371
    %v1373 = vrot.slane %v1368, %v1372
    %v1375 = vmul.f32 %v1366, %v1373
    %v1376 = vmul.f32 %v1367, %v1373
    %v1377 = vld [vmem:[%s4] sm:$0x1]
    %v1379 = vlaneseq
    %v1380 = vshrl.u32 %v1379, 7
    %v1381 = vsub.s32 0, %v1380
    %v1382 = vrot.slane %v1377, %v1381
    %v1384 = vadd.f32 %v1375, %v1382
    %v1385 = vadd.f32 %v1376, %v1382
    %v1386 = vld [vmem:[%s5] sm:$0xf]
    %v1387 = vld [vmem:[%s5 + $0x4] sm:$0xf]
    %v1388 = vunpack.c.l.bf16 %v1386
    %v1389 = vunpack.c.l.bf16 %v1387
    %v1390 = vmul.f32 %v1384, %v1388
    %v1391 = vmul.f32 %v1385, %v1389
    %1392 = vadd.xlane.f32.xlu0 %v1390
    %v1393 = vpop.xlane.xlu0 %1392
    %1394 = vadd.xlane.f32.xlu0 %v1391
    %v1395 = vpop.xlane.xlu0 %1394
    %v1396 = vld [vmem:[%s6] sm:$0xf]
    %v1397 = vld [vmem:[%s6 + $0x4] sm:$0xf]
    %v1398 = vunpack.c.l.bf16 %v1396
    %v1399 = vunpack.c.l.bf16 %v1397
    %v1400 = vmul.f32 %v1384, %v1398
    %v1401 = vmul.f32 %v1385, %v1399
    %1402 = vadd.xlane.f32.xlu0 %v1400
    %v1403 = vpop.xlane.xlu0 %1402
    %1404 = vadd.xlane.f32.xlu0 %v1401
    %v1405 = vpop.xlane.xlu0 %1404
    %vm1406 = vcmask 7168
    %v1407 = vsel %vm1406, %v1393, %v1403
    %v1408 = vsel %vm1406, %v1395, %v1405
    %v1409 = vxor.u32 %v1407, 2147483648
    %v1410 = vxor.u32 %v1408, 2147483648
    %v1411 = vmul.f32 %v1409, 1.442695
    %v1412 = vpow.pop %v1411
    %v1413 = vmul.f32 %v1410, 1.442695
    %v1414 = vpow.pop %v1413
    %v1415 = vadd.f32 %v1412, 1.0
    %v1416 = vadd.f32 %v1414, 1.0
    %v1417 = vrcp.pop %v1415
    %v1418 = vmul.f32 1.0, %v1417
    %v1419 = vrcp.pop %v1416
    %v1420 = vmul.f32 1.0, %v1419
    %vm1421 = vcmask 15360
    %1422 = vst.msk [vmem:[%s7] sm:$0xff] %vm1421, %v1418
    %1423 = vst.msk [vmem:[%s7 + $0x8] sm:$0xff] %vm1421, %v1420
  $region37: #{mean_tucker_forward.1} parent=0 // pred_fallthru
    _
  // Predicated region
  $region38: #{mean_tucker_forward.1} parent=0 // pred_check
    _
  $region39: #{mean_tucker_forward.1} parent=0 // pred_check_branch
    %1425 = sbr.rel (0) target = $region41
  $region40: #{mean_tucker_forward.1} parent=0 // pred_region
    _
  $region41: #{mean_tucker_forward.1} parent=0 // pred_fallthru
    _
  // Predicated region
  $region42: #{mean_tucker_forward.1} parent=0 // pred_check
    _
  $region43: #{mean_tucker_forward.1} parent=0 // pred_check_branch
    %1427 = sbr.rel (0) target = $region45
  $region44: #{mean_tucker_forward.1} parent=0 // pred_region
    _
  $region45: #{mean_tucker_forward.1} parent=0 // pred_fallthru
    _

</llo_original>
